<compile_context>
chip_gen: v6e
topology: v6e:2x2x1
jax: 0.10.0
libtpu: 0.0.40
codegen_flags: <defaults>
</compile_context>

<pallas_src>
import numpy as np
import jax
import jax.numpy as jnp
from jax.experimental import pallas as pl
from jax.experimental.pallas import tpu as pltpu

# ---- model hyper-parameters (small, consistent with PiVAE defaults) ---------
X_DIM = 32
U_DIM = 3                            # number of discrete labels (discrete_labels=True)
Z_DIM = 4
BATCH = 16

ENC_HID = 64                         # encoder_hidden_layer_dim (default 120, shrunk)
N_GIN_BLOCKS = 2                     # decoder_n_gin_blocks
GIN_DEPTH = 2                        # decoder_gin_block_depth
N_AFF = N_GIN_BLOCKS * GIN_DEPTH
SLICE = X_DIM // 2                   # decoder_affine_input_layer_slice_dim default
AFF_HID = X_DIM // 4                 # decoder_affine_hidden_layer_dim default
NFLOW_HID = X_DIM // 4               # decoder_nflow_hidden_layer_dim default
AFF_OUT = 2 * (X_DIM - SLICE) - 1    # MLP emits s (|x2|-1 free elems) and t (|x2|)
FR_MIN, FR_MAX = 1e-7, 1e7           # decoder_fr_clamp_{min,max}

# batch tile: single grid step for the demo batch (overhead-bound regime);
# raise to 128/256 for large batches.
TB = BATCH

# packed slab geometry (lane-dense, single DMA each way)
IN_W = 128                           # [ x | lam_mean | lam_log_var | eps | 0-pad ]
OUT_W = 128                          # [ fr | post_m | post_lv | z_m | z_lv | z_s | 0-pad ]


# ------------------------------- kernel --------------------------------------
def pivae_kernel(data_ref, ew0_ref, ew1b_ref, ew2b_ref, nfA_ref, nfB_ref,
                 affA_ref, affB_ref, out_ref):
    f32 = jnp.float32
    dot = lambda a, b: jnp.dot(a, b, preferred_element_type=f32)

    data = data_ref[...]
    x = data[:, 0:X_DIM]
    lam_m = data[:, X_DIM:X_DIM + Z_DIM]
    lam_lv = data[:, X_DIM + Z_DIM:X_DIM + 2 * Z_DIM]
    eps = data[:, X_DIM + 2 * Z_DIM:X_DIM + 3 * Z_DIM]

    # ---- MLPEncoder: tanh hidden layers, head split as [z_mean | z_log_var] --
    ew0 = ew0_ref[...]
    ew1b = ew1b_ref[...]                      # rows 0:H = W1, row H = b0, row H+1 = b1
    ew2b = ew2b_ref[...]                      # rows 0:H = W2, row H = b2
    h = jnp.tanh(dot(x, ew0) + ew1b[ENC_HID:ENC_HID + 1, :])
    h = jnp.tanh(dot(h, ew1b[0:ENC_HID, :]) + ew1b[ENC_HID + 1:ENC_HID + 2, :])
    enc_out = dot(h, ew2b[0:ENC_HID, :]) + ew2b[ENC_HID:ENC_HID + 1, :]
    z_mean = enc_out[:, :Z_DIM]
    z_log_var = enc_out[:, Z_DIM:]

    # ---- compute_posterior (product of diagonal Gaussians, stable form) -----
    dlv = z_log_var - lam_lv
    sig = jax.nn.sigmoid(-dlv)                # = 1 / (1 + exp(dlv))
    post_mean = z_mean * sig + lam_m * (1.0 - sig)
    mx = jnp.maximum(z_log_var, lam_lv)       # stable log(exp(a)+exp(b))
    post_log_var = z_log_var + lam_lv - (
        mx + jnp.log(jnp.exp(z_log_var - mx) + jnp.exp(lam_lv - mx)))

    # reparameterisation: eps ~ N(0,1) supplied from outside (torch.randn_like)
    z_sample = post_mean + jnp.exp(0.5 * post_log_var) * eps

    # ------------------------- GINFlowDecoder ---------------------------------
    # NFlowLayer: h = concat(z, MLP(z)), ReLU hidden layers
    nfA = nfA_ref[...]                        # rows 0:4 W0, 4:12 W1, 12 b0, 13 b1
    nfB = nfB_ref[...]                        # rows 0:8 W2, 8 b2
    r1 = Z_DIM + NFLOW_HID
    t = jax.nn.relu(dot(z_sample, nfA[0:Z_DIM, :]) + nfA[r1:r1 + 1, :])
    t = jax.nn.relu(dot(t, nfA[Z_DIM:r1, :]) + nfA[r1 + 1:r1 + 2, :])
    t_nf = dot(t, nfB[0:NFLOW_HID, :]) + nfB[NFLOW_HID:NFLOW_HID + 1, :]
    h = jnp.concatenate([z_sample, t_nf], axis=-1)        # (TB, X_DIM), "physical" order

    # GIN blocks: block permutation / split / -sum(s) / swap were folded into
    # the packed weights at init, so every AffineCouplingLayer is simply
    #   h <- h * exp(S(h)) + T(h)
    # with S = 0, T = 0 on the pass-through half (exp(0) = 1).
    affA = affA_ref[...]                      # (N_AFF, 48, 8)
    affB = affB_ref[...]                      # (N_AFF, 16, 64)
    rb = X_DIM + AFF_HID
    for l in range(N_AFF):
        w0 = affA[l, 0:X_DIM, :]
        w1 = affA[l, X_DIM:rb, :]
        b0 = affA[l, rb:rb + 1, :]
        b1 = affA[l, rb + 1:rb + 2, :]
        w2 = affB[l, 0:AFF_HID, :]
        b2 = affB[l, AFF_HID:AFF_HID + 1, :]
        hh = jax.nn.relu(dot(h, w0) + b0)
        hh = jax.nn.relu(dot(hh, w1) + b1)
        st = dot(hh, w2) + b2                 # (TB, 2*X_DIM) = [scale | translate]
        h = h * jnp.exp(st[:, :X_DIM]) + st[:, X_DIM:]

    # poisson observation model: softplus firing rate, clamped in PiVAE.forward
    fr = jnp.maximum(h, 0.0) + jnp.log(1.0 + jnp.exp(-jnp.abs(h)))
    fr = jnp.clip(fr, FR_MIN, FR_MAX)

    pad = jnp.zeros((h.shape[0], OUT_W - (X_DIM + 5 * Z_DIM)), f32)
    out_ref[...] = jnp.concatenate(
        [fr, post_mean, post_log_var, z_mean, z_log_var, z_sample, pad], axis=-1)


# -------------------------- parameter initialisation -------------------------
def _linear_np(key, fan_in, fan_out):
    # matches nn.Linear default init: U(-1/sqrt(fan_in), 1/sqrt(fan_in))
    kw, kb = jax.random.split(key)
    bound = 1.0 / np.sqrt(fan_in)
    w = np.asarray(jax.random.uniform(kw, (fan_in, fan_out), jnp.float32, -bound, bound))
    b = np.asarray(jax.random.uniform(kb, (fan_out,), jnp.float32, -bound, bound))
    return w, b


def _mlp_np(key, dims):
    ks = jax.random.split(key, len(dims) - 1)
    return [_linear_np(k, di, do) for k, di, do in zip(ks, dims[:-1], dims[1:])]


def init_params(key):
    keys = jax.random.split(key, 5)
    # ZPriorDiscrete: two nn.Embedding tables ~ N(0, 1) (nn.Embedding default)
    emb_mean = jax.random.normal(keys[0], (U_DIM, Z_DIM), jnp.float32)
    emb_log_var = jax.random.normal(keys[1], (U_DIM, Z_DIM), jnp.float32)

    # raw (unfolded) weights, kept for the pure-JAX reference check
    enc = _mlp_np(keys[2], [X_DIM, ENC_HID, ENC_HID, 2 * Z_DIM])
    nflow = _mlp_np(keys[3], [Z_DIM, NFLOW_HID, NFLOW_HID, X_DIM - Z_DIM])
    aff_keys = jax.random.split(keys[4], N_AFF)
    aff = [_mlp_np(k, [SLICE, AFF_HID, AFF_HID, AFF_OUT]) for k in aff_keys]

    # TODO(synk): exact permutation indices / coupling concat order of the
    # upstream pytorch port are not in the given source; a fixed deterministic
    # per-block permutation (np.random.RandomState(b), as in the original
    # pi-VAE TF code) is used.
    perms = [np.random.RandomState(b).permutation(X_DIM) for b in range(N_GIN_BLOCKS)]

    # --- encoder packing: biases appended as extra rows -> 3 arrays ----------
    (w0, b0), (w1, b1), (w2, b2) = enc
    ew1b = np.zeros((ENC_HID + 8, ENC_HID), np.float32)
    ew1b[:ENC_HID] = w1
    ew1b[ENC_HID] = b0
    ew1b[ENC_HID + 1] = b1
    ew2b = np.zeros((ENC_HID + 8, 2 * Z_DIM), np.float32)
    ew2b[:ENC_HID] = w2
    ew2b[ENC_HID] = b2
    enc_w0 = w0

    # --- nflow packing --------------------------------------------------------
    (w0, b0), (w1, b1), (w2, b2) = nflow
    nfA = np.zeros((Z_DIM + NFLOW_HID + 8, NFLOW_HID), np.float32)
    nfA[:Z_DIM] = w0
    nfA[Z_DIM:Z_DIM + NFLOW_HID] = w1
    nfA[Z_DIM + NFLOW_HID] = b0
    nfA[Z_DIM + NFLOW_HID + 1] = b1
    nfB = np.zeros((NFLOW_HID + 8, X_DIM - Z_DIM), np.float32)
    nfB[:NFLOW_HID] = w2
    nfB[NFLOW_HID] = b2

    # --- affine coupling layers: fold permutation + split + GIN -sum + swap ---
    affA = np.zeros((N_AFF, X_DIM + AFF_HID + 8, AFF_HID), np.float32)
    affB = np.zeros((N_AFF, AFF_HID + 8, 2 * X_DIM), np.float32)
    pos = np.arange(X_DIM)            # logical feature j is stored at physical col pos[j]
    n2 = X_DIM - SLICE
    li = 0
    for blk in range(N_GIN_BLOCKS):
        pos = pos[perms[blk]]         # feature permutation = bookkeeping only
        for _ in range(GIN_DEPTH):
            (w0, b0), (w1, b1), (w2, b2) = aff[li]
            p1, p2 = pos[:SLICE], pos[SLICE:]
            # fold the x1 column-gather into the first linear layer
            w0f = np.zeros((X_DIM, AFF_HID), np.float32)
            w0f[p1, :] = w0
            # extend the last layer so it directly emits per-physical-column
            # scale (incl. the -sum(s) GIN element, which is linear) & translate
            ws = np.concatenate(
                [w2[:, :n2 - 1], -w2[:, :n2 - 1].sum(axis=1, keepdims=True)], axis=1)
            bs = np.concatenate([b2[:n2 - 1], [-b2[:n2 - 1].sum()]])
            wt, bt = w2[:, n2 - 1:], b2[n2 - 1:]
            W2 = np.zeros((AFF_HID, 2 * X_DIM), np.float32)
            B2 = np.zeros((2 * X_DIM,), np.float32)
            W2[:, p2] = ws
            B2[p2] = bs
            W2[:, X_DIM + p2] = wt
            B2[X_DIM + p2] = bt
            affA[li, :X_DIM] = w0f
            affA[li, X_DIM:X_DIM + AFF_HID] = w1
            affA[li, X_DIM + AFF_HID] = b0
            affA[li, X_DIM + AFF_HID + 1] = b1
            affB[li, :AFF_HID] = W2
            affB[li, AFF_HID] = B2
            pos = np.concatenate([p2, p1])     # output swap concat(y2, x1)
            li += 1

    return {
        "emb_mean": emb_mean, "emb_log_var": emb_log_var,
        "enc_w0": jnp.asarray(enc_w0), "enc_w1b": jnp.asarray(ew1b),
        "enc_w2b": jnp.asarray(ew2b),
        "nf_a": jnp.asarray(nfA), "nf_b": jnp.asarray(nfB),
        "aff_a": jnp.asarray(affA), "aff_b": jnp.asarray(affB),
        "out_perm": pos,                       # final logical -> physical column map
        "raw_enc": enc, "raw_nflow": nflow, "raw_aff": aff, "perms": perms,
    }


# ------------------------------- wrapper --------------------------------------
def pivae_forward(x, u_labels, eps, params):
    B = x.shape[0]
    # ZPriorDiscrete: nn.Embedding lookup, done wrapper-side (free XLA gather)
    lam_mean = params["emb_mean"][u_labels]
    lam_log_var = params["emb_log_var"][u_labels]

    pad = jnp.zeros((B, IN_W - (X_DIM + 3 * Z_DIM)), jnp.float32)
    data = jnp.concatenate([x, lam_mean, lam_log_var, eps, pad], axis=-1)

    weights = [params[n] for n in
               ("enc_w0", "enc_w1b", "enc_w2b", "nf_a", "nf_b", "aff_a", "aff_b")]

    batch_spec = lambda w: pl.BlockSpec((TB, w), lambda i: (i, 0))
    full_spec = lambda a: pl.BlockSpec(a.shape, lambda i, nd=a.ndim: (0,) * nd)

    out = pl.pallas_call(
        pivae_kernel,
        grid=(B // TB,),
        in_specs=[batch_spec(IN_W)] + [full_spec(w) for w in weights],
        out_specs=batch_spec(OUT_W),
        out_shape=jax.ShapeDtypeStruct((B, OUT_W), jnp.float32),
        compiler_params=pltpu.CompilerParams(dimension_semantics=("parallel",)),
    )(data, *weights)

    # undo the static physical column ordering of the decoder (layout plumbing)
    fr = out[:, :X_DIM][:, params["out_perm"]]
    o = X_DIM
    return {
        "firing_rate": fr,
        "lambda_mean": lam_mean,
        "lambda_log_variance": lam_log_var,
        "posterior_mean": out[:, o:o + Z_DIM],
        "posterior_log_variance": out[:, o + Z_DIM:o + 2 * Z_DIM],
        "z_mean": out[:, o + 2 * Z_DIM:o + 3 * Z_DIM],
        "z_log_variance": out[:, o + 3 * Z_DIM:o + 4 * Z_DIM],
        "z_sample": out[:, o + 4 * Z_DIM:o + 5 * Z_DIM],
    }


# ----------------------- pure-JAX reference (raw weights) ---------------------
def pivae_reference(x, u_labels, eps, params):
    lam_mean = params["emb_mean"][u_labels]
    lam_log_var = params["emb_log_var"][u_labels]

    def mlp(h, layers, act):
        for i, (w, b) in enumerate(layers):
            h = h @ w + b
            if i < len(layers) - 1:
                h = act(h)
        return h

    enc_out = mlp(x, params["raw_enc"], jnp.tanh)
    z_mean, z_log_var = enc_out[:, :Z_DIM], enc_out[:, Z_DIM:]
    dlv = z_log_var - lam_log_var
    post_mean = z_mean / (1.0 + jnp.exp(dlv)) + lam_mean / (1.0 + jnp.exp(-dlv))
    post_log_var = z_log_var + lam_log_var - jnp.log(
        jnp.exp(z_log_var) + jnp.exp(lam_log_var))
    z_sample = post_mean + jnp.exp(0.5 * post_log_var) * eps

    t_nf = mlp(z_sample, params["raw_nflow"], jax.nn.relu)
    h = jnp.concatenate([z_sample, t_nf], axis=-1)
    li = 0
    for blk in range(N_GIN_BLOCKS):
        h = h[:, params["perms"][blk]]
        for _ in range(GIN_DEPTH):
            x1, x2 = h[:, :SLICE], h[:, SLICE:]
            st = mlp(x1, params["raw_aff"][li], jax.nn.relu)
            s_free = st[:, :X_DIM - SLICE - 1]
            s = jnp.concatenate([s_free, -s_free.sum(-1, keepdims=True)], axis=-1)
            tr = st[:, X_DIM - SLICE - 1:]
            h = jnp.concatenate([x2 * jnp.exp(s) + tr, x1], axis=-1)
            li += 1
    fr = jnp.clip(jax.nn.softplus(h), FR_MIN, FR_MAX)
    return {"firing_rate": fr, "posterior_mean": post_mean,
            "posterior_log_variance": post_log_var, "z_mean": z_mean,
            "z_log_variance": z_log_var, "z_sample": z_sample}


if __name__ == "__main__":
    key = jax.random.PRNGKey(0)
    k_x, k_u, k_eps, k_p = jax.random.split(key, 4)

    x = jax.random.normal(k_x, (BATCH, X_DIM), jnp.float32)
    u_labels = jax.random.randint(k_u, (BATCH,), 0, U_DIM)
    # torch.randn_like noise for the reparameterisation trick, passed in explicitly
    eps = jax.random.normal(k_eps, (BATCH, Z_DIM), jnp.float32)

    params = init_params(k_p)

    out = pivae_forward(x, u_labels, eps, params)
    jax.block_until_ready(out)

    # validate the weight-folding / packing against a plain-JAX reference
    ref = pivae_reference(x, u_labels, eps, params)
    for k in ("firing_rate", "posterior_mean", "posterior_log_variance",
              "z_mean", "z_log_variance", "z_sample"):
        np.testing.assert_allclose(np.asarray(out[k]), np.asarray(ref[k]),
                                   rtol=2e-3, atol=2e-3)

    assert out["firing_rate"].shape == (BATCH, X_DIM)
    assert out["posterior_mean"].shape == (BATCH, Z_DIM)
    assert bool(jnp.all(out["firing_rate"] >= FR_MIN))
    print("KERNEL_OK")
</pallas_src>

<mosaic_0001>
module attributes {stable_mosaic.version = 11 : i64} {
  func.func @pivae_kernel(%arg0: i32, %arg1: memref<16x128xf32, #tpu.memory_space<vmem>>, %arg2: memref<32x64xf32, #tpu.memory_space<vmem>>, %arg3: memref<72x64xf32, #tpu.memory_space<vmem>>, %arg4: memref<72x8xf32, #tpu.memory_space<vmem>>, %arg5: memref<20x8xf32, #tpu.memory_space<vmem>>, %arg6: memref<16x28xf32, #tpu.memory_space<vmem>>, %arg7: memref<4x48x8xf32, #tpu.memory_space<vmem>>, %arg8: memref<4x16x64xf32, #tpu.memory_space<vmem>>, %arg9: memref<16x128xf32, #tpu.memory_space<vmem>>) attributes {dimension_semantics = [#tpu.dimension_semantics<parallel>], iteration_bounds = array<i64: 1>, scalar_prefetch = 0 : i64, scratch_operands = 0 : i64, tpu.core_type = #tpu.core_type<tc>, window_params = [{transform_indices = @transform_0, window_bounds = array<i64: 16, 128>}, {pipeline_mode = #tpu.pipeline_mode<synchronous>, transform_indices = @transform_1, window_bounds = array<i64: 32, 64>}, {pipeline_mode = #tpu.pipeline_mode<synchronous>, transform_indices = @transform_2, window_bounds = array<i64: 72, 64>}, {pipeline_mode = #tpu.pipeline_mode<synchronous>, transform_indices = @transform_3, window_bounds = array<i64: 72, 8>}, {pipeline_mode = #tpu.pipeline_mode<synchronous>, transform_indices = @transform_4, window_bounds = array<i64: 20, 8>}, {pipeline_mode = #tpu.pipeline_mode<synchronous>, transform_indices = @transform_5, window_bounds = array<i64: 16, 28>}, {pipeline_mode = #tpu.pipeline_mode<synchronous>, transform_indices = @transform_6, window_bounds = array<i64: 4, 48, 8>}, {pipeline_mode = #tpu.pipeline_mode<synchronous>, transform_indices = @transform_7, window_bounds = array<i64: 4, 16, 64>}, {transform_indices = @transform_8, window_bounds = array<i64: 16, 128>}]} {
    %c0 = arith.constant 0 : index
    %c0_0 = arith.constant 0 : index
    %0 = vector.load %arg1[%c0, %c0_0] : memref<16x128xf32, #tpu.memory_space<vmem>>, vector<16x128xf32>
    %1 = vector.extract_strided_slice %0 {offsets = [0, 0], sizes = [16, 32], strides = [1, 1]} : vector<16x128xf32> to vector<16x32xf32>
    %2 = vector.extract_strided_slice %0 {offsets = [0, 32], sizes = [16, 4], strides = [1, 1]} : vector<16x128xf32> to vector<16x4xf32>
    %3 = vector.extract_strided_slice %0 {offsets = [0, 36], sizes = [16, 4], strides = [1, 1]} : vector<16x128xf32> to vector<16x4xf32>
    %4 = vector.extract_strided_slice %0 {offsets = [0, 40], sizes = [16, 4], strides = [1, 1]} : vector<16x128xf32> to vector<16x4xf32>
    %c0_1 = arith.constant 0 : index
    %c0_2 = arith.constant 0 : index
    %5 = vector.load %arg2[%c0_1, %c0_2] : memref<32x64xf32, #tpu.memory_space<vmem>>, vector<32x64xf32>
    %c0_3 = arith.constant 0 : index
    %c0_4 = arith.constant 0 : index
    %6 = vector.load %arg3[%c0_3, %c0_4] : memref<72x64xf32, #tpu.memory_space<vmem>>, vector<72x64xf32>
    %c0_5 = arith.constant 0 : index
    %c0_6 = arith.constant 0 : index
    %7 = vector.load %arg4[%c0_5, %c0_6] : memref<72x8xf32, #tpu.memory_space<vmem>>, vector<72x8xf32>
    %cst = arith.constant dense<0.000000e+00> : vector<16x64xf32>
    %8 = tpu.matmul %1, %5, %cst {dimension_numbers = #tpu.dot_dimension_numbers<[1], [0], [0], [1], [0, 0, 1, 1], [], []>} : vector<16x32xf32>, vector<32x64xf32>, vector<16x64xf32> -> vector<16x64xf32>
    %9 = vector.extract_strided_slice %6 {offsets = [64, 0], sizes = [1, 64], strides = [1, 1]} : vector<72x64xf32> to vector<1x64xf32>
    %10 = vector.broadcast %9 : vector<1x64xf32> to vector<16x64xf32>
    %11 = arith.addf %8, %10 : vector<16x64xf32>
    %12 = math.tanh %11 : vector<16x64xf32>
    %13 = vector.extract_strided_slice %6 {offsets = [0, 0], sizes = [64, 64], strides = [1, 1]} : vector<72x64xf32> to vector<64x64xf32>
    %cst_7 = arith.constant dense<0.000000e+00> : vector<16x64xf32>
    %14 = tpu.matmul %12, %13, %cst_7 {dimension_numbers = #tpu.dot_dimension_numbers<[1], [0], [0], [1], [0, 0, 1, 1], [], []>} : vector<16x64xf32>, vector<64x64xf32>, vector<16x64xf32> -> vector<16x64xf32>
    %15 = vector.extract_strided_slice %6 {offsets = [65, 0], sizes = [1, 64], strides = [1, 1]} : vector<72x64xf32> to vector<1x64xf32>
    %16 = vector.broadcast %15 : vector<1x64xf32> to vector<16x64xf32>
    %17 = arith.addf %14, %16 : vector<16x64xf32>
    %18 = math.tanh %17 : vector<16x64xf32>
    %19 = vector.extract_strided_slice %7 {offsets = [0, 0], sizes = [64, 8], strides = [1, 1]} : vector<72x8xf32> to vector<64x8xf32>
    %cst_8 = arith.constant dense<0.000000e+00> : vector<16x8xf32>
    %20 = tpu.matmul %18, %19, %cst_8 {dimension_numbers = #tpu.dot_dimension_numbers<[1], [0], [0], [1], [0, 0, 1, 1], [], []>} : vector<16x64xf32>, vector<64x8xf32>, vector<16x8xf32> -> vector<16x8xf32>
    %21 = vector.extract_strided_slice %7 {offsets = [64, 0], sizes = [1, 8], strides = [1, 1]} : vector<72x8xf32> to vector<1x8xf32>
    %22 = vector.broadcast %21 : vector<1x8xf32> to vector<16x8xf32>
    %23 = arith.addf %20, %22 : vector<16x8xf32>
    %24 = vector.extract_strided_slice %23 {offsets = [0, 0], sizes = [16, 4], strides = [1, 1]} : vector<16x8xf32> to vector<16x4xf32>
    %25 = vector.extract_strided_slice %23 {offsets = [0, 4], sizes = [16, 4], strides = [1, 1]} : vector<16x8xf32> to vector<16x4xf32>
    %26 = arith.subf %25, %3 : vector<16x4xf32>
    %cst_9 = arith.constant 0.000000e+00 : f32
    %27 = vector.broadcast %cst_9 : f32 to vector<16x4xf32>
    %28 = arith.subf %27, %26 : vector<16x4xf32>
    %29 = arith.negf %28 : vector<16x4xf32>
    %30 = math.exp %29 : vector<16x4xf32>
    %cst_10 = arith.constant 1.000000e+00 : f32
    %31 = vector.broadcast %cst_10 : f32 to vector<16x4xf32>
    %32 = arith.addf %31, %30 : vector<16x4xf32>
    %33 = arith.divf %31, %32 : vector<16x4xf32>
    %34 = arith.mulf %24, %33 : vector<16x4xf32>
    %cst_11 = arith.constant 1.000000e+00 : f32
    %35 = vector.broadcast %cst_11 : f32 to vector<16x4xf32>
    %36 = arith.subf %35, %33 : vector<16x4xf32>
    %37 = arith.mulf %2, %36 : vector<16x4xf32>
    %38 = arith.addf %34, %37 : vector<16x4xf32>
    %39 = arith.maximumf %25, %3 : vector<16x4xf32>
    %40 = arith.addf %25, %3 : vector<16x4xf32>
    %41 = arith.subf %25, %39 : vector<16x4xf32>
    %42 = math.exp %41 : vector<16x4xf32>
    %43 = arith.subf %3, %39 : vector<16x4xf32>
    %44 = math.exp %43 : vector<16x4xf32>
    %45 = arith.addf %42, %44 : vector<16x4xf32>
    %46 = math.log %45 : vector<16x4xf32>
    %47 = arith.addf %39, %46 : vector<16x4xf32>
    %48 = arith.subf %40, %47 : vector<16x4xf32>
    %cst_12 = arith.constant 5.000000e-01 : f32
    %49 = vector.broadcast %cst_12 : f32 to vector<16x4xf32>
    %50 = arith.mulf %49, %48 : vector<16x4xf32>
    %51 = math.exp %50 : vector<16x4xf32>
    %52 = arith.mulf %51, %4 : vector<16x4xf32>
    %53 = arith.addf %38, %52 : vector<16x4xf32>
    %c0_13 = arith.constant 0 : index
    %c0_14 = arith.constant 0 : index
    %54 = vector.load %arg5[%c0_13, %c0_14] : memref<20x8xf32, #tpu.memory_space<vmem>>, vector<20x8xf32>
    %c0_15 = arith.constant 0 : index
    %c0_16 = arith.constant 0 : index
    %55 = vector.load %arg6[%c0_15, %c0_16] : memref<16x28xf32, #tpu.memory_space<vmem>>, vector<16x28xf32>
    %56 = vector.extract_strided_slice %54 {offsets = [0, 0], sizes = [4, 8], strides = [1, 1]} : vector<20x8xf32> to vector<4x8xf32>
    %cst_17 = arith.constant dense<0.000000e+00> : vector<16x8xf32>
    %57 = tpu.matmul %53, %56, %cst_17 {dimension_numbers = #tpu.dot_dimension_numbers<[1], [0], [0], [1], [0, 0, 1, 1], [], []>} : vector<16x4xf32>, vector<4x8xf32>, vector<16x8xf32> -> vector<16x8xf32>
    %58 = vector.extract_strided_slice %54 {offsets = [12, 0], sizes = [1, 8], strides = [1, 1]} : vector<20x8xf32> to vector<1x8xf32>
    %59 = vector.broadcast %58 : vector<1x8xf32> to vector<16x8xf32>
    %60 = arith.addf %57, %59 : vector<16x8xf32>
    %cst_18 = arith.constant 0.000000e+00 : f32
    %61 = vector.broadcast %cst_18 : f32 to vector<16x8xf32>
    %62 = arith.maximumf %60, %61 : vector<16x8xf32>
    %63 = vector.extract_strided_slice %54 {offsets = [4, 0], sizes = [8, 8], strides = [1, 1]} : vector<20x8xf32> to vector<8x8xf32>
    %cst_19 = arith.constant dense<0.000000e+00> : vector<16x8xf32>
    %64 = tpu.matmul %62, %63, %cst_19 {dimension_numbers = #tpu.dot_dimension_numbers<[1], [0], [0], [1], [0, 0, 1, 1], [], []>} : vector<16x8xf32>, vector<8x8xf32>, vector<16x8xf32> -> vector<16x8xf32>
    %65 = vector.extract_strided_slice %54 {offsets = [13, 0], sizes = [1, 8], strides = [1, 1]} : vector<20x8xf32> to vector<1x8xf32>
    %66 = vector.broadcast %65 : vector<1x8xf32> to vector<16x8xf32>
    %67 = arith.addf %64, %66 : vector<16x8xf32>
    %cst_20 = arith.constant 0.000000e+00 : f32
    %68 = vector.broadcast %cst_20 : f32 to vector<16x8xf32>
    %69 = arith.maximumf %67, %68 : vector<16x8xf32>
    %70 = vector.extract_strided_slice %55 {offsets = [0, 0], sizes = [8, 28], strides = [1, 1]} : vector<16x28xf32> to vector<8x28xf32>
    %cst_21 = arith.constant dense<0.000000e+00> : vector<16x28xf32>
    %71 = tpu.matmul %69, %70, %cst_21 {dimension_numbers = #tpu.dot_dimension_numbers<[1], [0], [0], [1], [0, 0, 1, 1], [], []>} : vector<16x8xf32>, vector<8x28xf32>, vector<16x28xf32> -> vector<16x28xf32>
    %72 = vector.extract_strided_slice %55 {offsets = [8, 0], sizes = [1, 28], strides = [1, 1]} : vector<16x28xf32> to vector<1x28xf32>
    %73 = vector.broadcast %72 : vector<1x28xf32> to vector<16x28xf32>
    %74 = arith.addf %71, %73 : vector<16x28xf32>
    %75 = tpu.concatenate %53, %74 in 1 : vector<16x4xf32>, vector<16x28xf32> -> vector<16x32xf32>
    %c0_22 = arith.constant 0 : index
    %c0_23 = arith.constant 0 : index
    %c0_24 = arith.constant 0 : index
    %76 = vector.load %arg7[%c0_22, %c0_23, %c0_24] : memref<4x48x8xf32, #tpu.memory_space<vmem>>, vector<4x48x8xf32>
    %c0_25 = arith.constant 0 : index
    %c0_26 = arith.constant 0 : index
    %c0_27 = arith.constant 0 : index
    %77 = vector.load %arg8[%c0_25, %c0_26, %c0_27] : memref<4x16x64xf32, #tpu.memory_space<vmem>>, vector<4x16x64xf32>
    %78 = vector.extract_strided_slice %76 {offsets = [0, 0, 0], sizes = [1, 32, 8], strides = [1, 1, 1]} : vector<4x48x8xf32> to vector<1x32x8xf32>
    %79 = vector.shape_cast %78 : vector<1x32x8xf32> to vector<32x8xf32>
    %80 = vector.extract_strided_slice %76 {offsets = [0, 32, 0], sizes = [1, 8, 8], strides = [1, 1, 1]} : vector<4x48x8xf32> to vector<1x8x8xf32>
    %81 = vector.shape_cast %80 : vector<1x8x8xf32> to vector<8x8xf32>
    %82 = vector.extract_strided_slice %76 {offsets = [0, 40, 0], sizes = [1, 1, 8], strides = [1, 1, 1]} : vector<4x48x8xf32> to vector<1x1x8xf32>
    %83 = vector.shape_cast %82 : vector<1x1x8xf32> to vector<1x8xf32>
    %84 = vector.extract_strided_slice %76 {offsets = [0, 41, 0], sizes = [1, 1, 8], strides = [1, 1, 1]} : vector<4x48x8xf32> to vector<1x1x8xf32>
    %85 = vector.shape_cast %84 : vector<1x1x8xf32> to vector<1x8xf32>
    %86 = vector.extract_strided_slice %77 {offsets = [0, 0, 0], sizes = [1, 8, 64], strides = [1, 1, 1]} : vector<4x16x64xf32> to vector<1x8x64xf32>
    %87 = vector.shape_cast %86 : vector<1x8x64xf32> to vector<8x64xf32>
    %88 = vector.extract_strided_slice %77 {offsets = [0, 8, 0], sizes = [1, 1, 64], strides = [1, 1, 1]} : vector<4x16x64xf32> to vector<1x1x64xf32>
    %89 = vector.shape_cast %88 : vector<1x1x64xf32> to vector<1x64xf32>
    %cst_28 = arith.constant dense<0.000000e+00> : vector<16x8xf32>
    %90 = tpu.matmul %75, %79, %cst_28 {dimension_numbers = #tpu.dot_dimension_numbers<[1], [0], [0], [1], [0, 0, 1, 1], [], []>} : vector<16x32xf32>, vector<32x8xf32>, vector<16x8xf32> -> vector<16x8xf32>
    %91 = vector.broadcast %83 : vector<1x8xf32> to vector<16x8xf32>
    %92 = arith.addf %90, %91 : vector<16x8xf32>
    %cst_29 = arith.constant 0.000000e+00 : f32
    %93 = vector.broadcast %cst_29 : f32 to vector<16x8xf32>
    %94 = arith.maximumf %92, %93 : vector<16x8xf32>
    %cst_30 = arith.constant dense<0.000000e+00> : vector<16x8xf32>
    %95 = tpu.matmul %94, %81, %cst_30 {dimension_numbers = #tpu.dot_dimension_numbers<[1], [0], [0], [1], [0, 0, 1, 1], [], []>} : vector<16x8xf32>, vector<8x8xf32>, vector<16x8xf32> -> vector<16x8xf32>
    %96 = vector.broadcast %85 : vector<1x8xf32> to vector<16x8xf32>
    %97 = arith.addf %95, %96 : vector<16x8xf32>
    %cst_31 = arith.constant 0.000000e+00 : f32
    %98 = vector.broadcast %cst_31 : f32 to vector<16x8xf32>
    %99 = arith.maximumf %97, %98 : vector<16x8xf32>
    %cst_32 = arith.constant dense<0.000000e+00> : vector<16x64xf32>
    %100 = tpu.matmul %99, %87, %cst_32 {dimension_numbers = #tpu.dot_dimension_numbers<[1], [0], [0], [1], [0, 0, 1, 1], [], []>} : vector<16x8xf32>, vector<8x64xf32>, vector<16x64xf32> -> vector<16x64xf32>
    %101 = vector.broadcast %89 : vector<1x64xf32> to vector<16x64xf32>
    %102 = arith.addf %100, %101 : vector<16x64xf32>
    %103 = vector.extract_strided_slice %102 {offsets = [0, 0], sizes = [16, 32], strides = [1, 1]} : vector<16x64xf32> to vector<16x32xf32>
    %104 = math.exp %103 : vector<16x32xf32>
    %105 = arith.mulf %75, %104 : vector<16x32xf32>
    %106 = vector.extract_strided_slice %102 {offsets = [0, 32], sizes = [16, 32], strides = [1, 1]} : vector<16x64xf32> to vector<16x32xf32>
    %107 = arith.addf %105, %106 : vector<16x32xf32>
    %108 = vector.extract_strided_slice %76 {offsets = [1, 0, 0], sizes = [1, 32, 8], strides = [1, 1, 1]} : vector<4x48x8xf32> to vector<1x32x8xf32>
    %109 = vector.shape_cast %108 : vector<1x32x8xf32> to vector<32x8xf32>
    %110 = vector.extract_strided_slice %76 {offsets = [1, 32, 0], sizes = [1, 8, 8], strides = [1, 1, 1]} : vector<4x48x8xf32> to vector<1x8x8xf32>
    %111 = vector.shape_cast %110 : vector<1x8x8xf32> to vector<8x8xf32>
    %112 = vector.extract_strided_slice %76 {offsets = [1, 40, 0], sizes = [1, 1, 8], strides = [1, 1, 1]} : vector<4x48x8xf32> to vector<1x1x8xf32>
    %113 = vector.shape_cast %112 : vector<1x1x8xf32> to vector<1x8xf32>
    %114 = vector.extract_strided_slice %76 {offsets = [1, 41, 0], sizes = [1, 1, 8], strides = [1, 1, 1]} : vector<4x48x8xf32> to vector<1x1x8xf32>
    %115 = vector.shape_cast %114 : vector<1x1x8xf32> to vector<1x8xf32>
    %116 = vector.extract_strided_slice %77 {offsets = [1, 0, 0], sizes = [1, 8, 64], strides = [1, 1, 1]} : vector<4x16x64xf32> to vector<1x8x64xf32>
    %117 = vector.shape_cast %116 : vector<1x8x64xf32> to vector<8x64xf32>
    %118 = vector.extract_strided_slice %77 {offsets = [1, 8, 0], sizes = [1, 1, 64], strides = [1, 1, 1]} : vector<4x16x64xf32> to vector<1x1x64xf32>
    %119 = vector.shape_cast %118 : vector<1x1x64xf32> to vector<1x64xf32>
    %cst_33 = arith.constant dense<0.000000e+00> : vector<16x8xf32>
    %120 = tpu.matmul %107, %109, %cst_33 {dimension_numbers = #tpu.dot_dimension_numbers<[1], [0], [0], [1], [0, 0, 1, 1], [], []>} : vector<16x32xf32>, vector<32x8xf32>, vector<16x8xf32> -> vector<16x8xf32>
    %121 = vector.broadcast %113 : vector<1x8xf32> to vector<16x8xf32>
    %122 = arith.addf %120, %121 : vector<16x8xf32>
    %cst_34 = arith.constant 0.000000e+00 : f32
    %123 = vector.broadcast %cst_34 : f32 to vector<16x8xf32>
    %124 = arith.maximumf %122, %123 : vector<16x8xf32>
    %cst_35 = arith.constant dense<0.000000e+00> : vector<16x8xf32>
    %125 = tpu.matmul %124, %111, %cst_35 {dimension_numbers = #tpu.dot_dimension_numbers<[1], [0], [0], [1], [0, 0, 1, 1], [], []>} : vector<16x8xf32>, vector<8x8xf32>, vector<16x8xf32> -> vector<16x8xf32>
    %126 = vector.broadcast %115 : vector<1x8xf32> to vector<16x8xf32>
    %127 = arith.addf %125, %126 : vector<16x8xf32>
    %cst_36 = arith.constant 0.000000e+00 : f32
    %128 = vector.broadcast %cst_36 : f32 to vector<16x8xf32>
    %129 = arith.maximumf %127, %128 : vector<16x8xf32>
    %cst_37 = arith.constant dense<0.000000e+00> : vector<16x64xf32>
    %130 = tpu.matmul %129, %117, %cst_37 {dimension_numbers = #tpu.dot_dimension_numbers<[1], [0], [0], [1], [0, 0, 1, 1], [], []>} : vector<16x8xf32>, vector<8x64xf32>, vector<16x64xf32> -> vector<16x64xf32>
    %131 = vector.broadcast %119 : vector<1x64xf32> to vector<16x64xf32>
    %132 = arith.addf %130, %131 : vector<16x64xf32>
    %133 = vector.extract_strided_slice %132 {offsets = [0, 0], sizes = [16, 32], strides = [1, 1]} : vector<16x64xf32> to vector<16x32xf32>
    %134 = math.exp %133 : vector<16x32xf32>
    %135 = arith.mulf %107, %134 : vector<16x32xf32>
    %136 = vector.extract_strided_slice %132 {offsets = [0, 32], sizes = [16, 32], strides = [1, 1]} : vector<16x64xf32> to vector<16x32xf32>
    %137 = arith.addf %135, %136 : vector<16x32xf32>
    %138 = vector.extract_strided_slice %76 {offsets = [2, 0, 0], sizes = [1, 32, 8], strides = [1, 1, 1]} : vector<4x48x8xf32> to vector<1x32x8xf32>
    %139 = vector.shape_cast %138 : vector<1x32x8xf32> to vector<32x8xf32>
    %140 = vector.extract_strided_slice %76 {offsets = [2, 32, 0], sizes = [1, 8, 8], strides = [1, 1, 1]} : vector<4x48x8xf32> to vector<1x8x8xf32>
    %141 = vector.shape_cast %140 : vector<1x8x8xf32> to vector<8x8xf32>
    %142 = vector.extract_strided_slice %76 {offsets = [2, 40, 0], sizes = [1, 1, 8], strides = [1, 1, 1]} : vector<4x48x8xf32> to vector<1x1x8xf32>
    %143 = vector.shape_cast %142 : vector<1x1x8xf32> to vector<1x8xf32>
    %144 = vector.extract_strided_slice %76 {offsets = [2, 41, 0], sizes = [1, 1, 8], strides = [1, 1, 1]} : vector<4x48x8xf32> to vector<1x1x8xf32>
    %145 = vector.shape_cast %144 : vector<1x1x8xf32> to vector<1x8xf32>
    %146 = vector.extract_strided_slice %77 {offsets = [2, 0, 0], sizes = [1, 8, 64], strides = [1, 1, 1]} : vector<4x16x64xf32> to vector<1x8x64xf32>
    %147 = vector.shape_cast %146 : vector<1x8x64xf32> to vector<8x64xf32>
    %148 = vector.extract_strided_slice %77 {offsets = [2, 8, 0], sizes = [1, 1, 64], strides = [1, 1, 1]} : vector<4x16x64xf32> to vector<1x1x64xf32>
    %149 = vector.shape_cast %148 : vector<1x1x64xf32> to vector<1x64xf32>
    %cst_38 = arith.constant dense<0.000000e+00> : vector<16x8xf32>
    %150 = tpu.matmul %137, %139, %cst_38 {dimension_numbers = #tpu.dot_dimension_numbers<[1], [0], [0], [1], [0, 0, 1, 1], [], []>} : vector<16x32xf32>, vector<32x8xf32>, vector<16x8xf32> -> vector<16x8xf32>
    %151 = vector.broadcast %143 : vector<1x8xf32> to vector<16x8xf32>
    %152 = arith.addf %150, %151 : vector<16x8xf32>
    %cst_39 = arith.constant 0.000000e+00 : f32
    %153 = vector.broadcast %cst_39 : f32 to vector<16x8xf32>
    %154 = arith.maximumf %152, %153 : vector<16x8xf32>
    %cst_40 = arith.constant dense<0.000000e+00> : vector<16x8xf32>
    %155 = tpu.matmul %154, %141, %cst_40 {dimension_numbers = #tpu.dot_dimension_numbers<[1], [0], [0], [1], [0, 0, 1, 1], [], []>} : vector<16x8xf32>, vector<8x8xf32>, vector<16x8xf32> -> vector<16x8xf32>
    %156 = vector.broadcast %145 : vector<1x8xf32> to vector<16x8xf32>
    %157 = arith.addf %155, %156 : vector<16x8xf32>
    %cst_41 = arith.constant 0.000000e+00 : f32
    %158 = vector.broadcast %cst_41 : f32 to vector<16x8xf32>
    %159 = arith.maximumf %157, %158 : vector<16x8xf32>
    %cst_42 = arith.constant dense<0.000000e+00> : vector<16x64xf32>
    %160 = tpu.matmul %159, %147, %cst_42 {dimension_numbers = #tpu.dot_dimension_numbers<[1], [0], [0], [1], [0, 0, 1, 1], [], []>} : vector<16x8xf32>, vector<8x64xf32>, vector<16x64xf32> -> vector<16x64xf32>
    %161 = vector.broadcast %149 : vector<1x64xf32> to vector<16x64xf32>
    %162 = arith.addf %160, %161 : vector<16x64xf32>
    %163 = vector.extract_strided_slice %162 {offsets = [0, 0], sizes = [16, 32], strides = [1, 1]} : vector<16x64xf32> to vector<16x32xf32>
    %164 = math.exp %163 : vector<16x32xf32>
    %165 = arith.mulf %137, %164 : vector<16x32xf32>
    %166 = vector.extract_strided_slice %162 {offsets = [0, 32], sizes = [16, 32], strides = [1, 1]} : vector<16x64xf32> to vector<16x32xf32>
    %167 = arith.addf %165, %166 : vector<16x32xf32>
    %168 = vector.extract_strided_slice %76 {offsets = [3, 0, 0], sizes = [1, 32, 8], strides = [1, 1, 1]} : vector<4x48x8xf32> to vector<1x32x8xf32>
    %169 = vector.shape_cast %168 : vector<1x32x8xf32> to vector<32x8xf32>
    %170 = vector.extract_strided_slice %76 {offsets = [3, 32, 0], sizes = [1, 8, 8], strides = [1, 1, 1]} : vector<4x48x8xf32> to vector<1x8x8xf32>
    %171 = vector.shape_cast %170 : vector<1x8x8xf32> to vector<8x8xf32>
    %172 = vector.extract_strided_slice %76 {offsets = [3, 40, 0], sizes = [1, 1, 8], strides = [1, 1, 1]} : vector<4x48x8xf32> to vector<1x1x8xf32>
    %173 = vector.shape_cast %172 : vector<1x1x8xf32> to vector<1x8xf32>
    %174 = vector.extract_strided_slice %76 {offsets = [3, 41, 0], sizes = [1, 1, 8], strides = [1, 1, 1]} : vector<4x48x8xf32> to vector<1x1x8xf32>
    %175 = vector.shape_cast %174 : vector<1x1x8xf32> to vector<1x8xf32>
    %176 = vector.extract_strided_slice %77 {offsets = [3, 0, 0], sizes = [1, 8, 64], strides = [1, 1, 1]} : vector<4x16x64xf32> to vector<1x8x64xf32>
    %177 = vector.shape_cast %176 : vector<1x8x64xf32> to vector<8x64xf32>
    %178 = vector.extract_strided_slice %77 {offsets = [3, 8, 0], sizes = [1, 1, 64], strides = [1, 1, 1]} : vector<4x16x64xf32> to vector<1x1x64xf32>
    %179 = vector.shape_cast %178 : vector<1x1x64xf32> to vector<1x64xf32>
    %cst_43 = arith.constant dense<0.000000e+00> : vector<16x8xf32>
    %180 = tpu.matmul %167, %169, %cst_43 {dimension_numbers = #tpu.dot_dimension_numbers<[1], [0], [0], [1], [0, 0, 1, 1], [], []>} : vector<16x32xf32>, vector<32x8xf32>, vector<16x8xf32> -> vector<16x8xf32>
    %181 = vector.broadcast %173 : vector<1x8xf32> to vector<16x8xf32>
    %182 = arith.addf %180, %181 : vector<16x8xf32>
    %cst_44 = arith.constant 0.000000e+00 : f32
    %183 = vector.broadcast %cst_44 : f32 to vector<16x8xf32>
    %184 = arith.maximumf %182, %183 : vector<16x8xf32>
    %cst_45 = arith.constant dense<0.000000e+00> : vector<16x8xf32>
    %185 = tpu.matmul %184, %171, %cst_45 {dimension_numbers = #tpu.dot_dimension_numbers<[1], [0], [0], [1], [0, 0, 1, 1], [], []>} : vector<16x8xf32>, vector<8x8xf32>, vector<16x8xf32> -> vector<16x8xf32>
    %186 = vector.broadcast %175 : vector<1x8xf32> to vector<16x8xf32>
    %187 = arith.addf %185, %186 : vector<16x8xf32>
    %cst_46 = arith.constant 0.000000e+00 : f32
    %188 = vector.broadcast %cst_46 : f32 to vector<16x8xf32>
    %189 = arith.maximumf %187, %188 : vector<16x8xf32>
    %cst_47 = arith.constant dense<0.000000e+00> : vector<16x64xf32>
    %190 = tpu.matmul %189, %177, %cst_47 {dimension_numbers = #tpu.dot_dimension_numbers<[1], [0], [0], [1], [0, 0, 1, 1], [], []>} : vector<16x8xf32>, vector<8x64xf32>, vector<16x64xf32> -> vector<16x64xf32>
    %191 = vector.broadcast %179 : vector<1x64xf32> to vector<16x64xf32>
    %192 = arith.addf %190, %191 : vector<16x64xf32>
    %193 = vector.extract_strided_slice %192 {offsets = [0, 0], sizes = [16, 32], strides = [1, 1]} : vector<16x64xf32> to vector<16x32xf32>
    %194 = math.exp %193 : vector<16x32xf32>
    %195 = arith.mulf %167, %194 : vector<16x32xf32>
    %196 = vector.extract_strided_slice %192 {offsets = [0, 32], sizes = [16, 32], strides = [1, 1]} : vector<16x64xf32> to vector<16x32xf32>
    %197 = arith.addf %195, %196 : vector<16x32xf32>
    %cst_48 = arith.constant 0.000000e+00 : f32
    %198 = vector.broadcast %cst_48 : f32 to vector<16x32xf32>
    %199 = arith.maximumf %197, %198 : vector<16x32xf32>
    %200 = math.absf %197 : vector<16x32xf32>
    %cst_49 = arith.constant 0.000000e+00 : f32
    %201 = vector.broadcast %cst_49 : f32 to vector<16x32xf32>
    %202 = arith.subf %201, %200 : vector<16x32xf32>
    %203 = math.exp %202 : vector<16x32xf32>
    %cst_50 = arith.constant 1.000000e+00 : f32
    %204 = vector.broadcast %cst_50 : f32 to vector<16x32xf32>
    %205 = arith.addf %204, %203 : vector<16x32xf32>
    %206 = math.log %205 : vector<16x32xf32>
    %207 = arith.addf %199, %206 : vector<16x32xf32>
    %cst_51 = arith.constant 1.000000e-07 : f32
    %cst_52 = arith.constant 1.000000e+07 : f32
    %208 = vector.broadcast %cst_51 : f32 to vector<16x32xf32>
    %209 = arith.maximumf %208, %207 : vector<16x32xf32>
    %210 = vector.broadcast %cst_52 : f32 to vector<16x32xf32>
    %211 = arith.minimumf %210, %209 : vector<16x32xf32>
    %cst_53 = arith.constant 0.000000e+00 : f32
    %212 = vector.broadcast %cst_53 : f32 to vector<16x76xf32>
    %213 = tpu.concatenate %211, %38, %48, %24, %25, %53, %212 in 1 : vector<16x32xf32>, vector<16x4xf32>, vector<16x4xf32>, vector<16x4xf32>, vector<16x4xf32>, vector<16x4xf32>, vector<16x76xf32> -> vector<16x128xf32>
    %c0_54 = arith.constant 0 : index
    %c0_55 = arith.constant 0 : index
    %214 = vector.load %arg9[%c0_54, %c0_55] : memref<16x128xf32, #tpu.memory_space<vmem>>, vector<16x128xf32>
    tpu.vector_store %arg9[%c0_54, %c0_55], %213 {strides = array<i32>} : memref<16x128xf32, #tpu.memory_space<vmem>>, vector<16x128xf32>,
    return
  }
  func.func @transform_0(%arg0: i32) -> (i32, i32) {
    %c0_i32 = arith.constant 0 : i32
    %c0_i32_0 = arith.constant 0 : i32
    return %arg0, %c0_i32 : i32, i32
  }
  func.func @transform_1(%arg0: i32) -> (i32, i32) {
    %c0_i32 = arith.constant 0 : i32
    %c0_i32_0 = arith.constant 0 : i32
    %c0_i32_1 = arith.constant 0 : i32
    return %c0_i32, %c0_i32_0 : i32, i32
  }
  func.func @transform_2(%arg0: i32) -> (i32, i32) {
    %c0_i32 = arith.constant 0 : i32
    %c0_i32_0 = arith.constant 0 : i32
    %c0_i32_1 = arith.constant 0 : i32
    return %c0_i32, %c0_i32_0 : i32, i32
  }
  func.func @transform_3(%arg0: i32) -> (i32, i32) {
    %c0_i32 = arith.constant 0 : i32
    %c0_i32_0 = arith.constant 0 : i32
    %c0_i32_1 = arith.constant 0 : i32
    return %c0_i32, %c0_i32_0 : i32, i32
  }
  func.func @transform_4(%arg0: i32) -> (i32, i32) {
    %c0_i32 = arith.constant 0 : i32
    %c0_i32_0 = arith.constant 0 : i32
    %c0_i32_1 = arith.constant 0 : i32
    return %c0_i32, %c0_i32_0 : i32, i32
  }
  func.func @transform_5(%arg0: i32) -> (i32, i32) {
    %c0_i32 = arith.constant 0 : i32
    %c0_i32_0 = arith.constant 0 : i32
    %c0_i32_1 = arith.constant 0 : i32
    return %c0_i32, %c0_i32_0 : i32, i32
  }
  func.func @transform_6(%arg0: i32) -> (i32, i32, i32) {
    %c0_i32 = arith.constant 0 : i32
    %c0_i32_0 = arith.constant 0 : i32
    %c0_i32_1 = arith.constant 0 : i32
    %c0_i32_2 = arith.constant 0 : i32
    return %c0_i32, %c0_i32_0, %c0_i32_1 : i32, i32, i32
  }
  func.func @transform_7(%arg0: i32) -> (i32, i32, i32) {
    %c0_i32 = arith.constant 0 : i32
    %c0_i32_0 = arith.constant 0 : i32
    %c0_i32_1 = arith.constant 0 : i32
    %c0_i32_2 = arith.constant 0 : i32
    return %c0_i32, %c0_i32_0, %c0_i32_1 : i32, i32, i32
  }
  func.func @transform_8(%arg0: i32) -> (i32, i32) {
    %c0_i32 = arith.constant 0 : i32
    %c0_i32_0 = arith.constant 0 : i32
    return %arg0, %c0_i32 : i32, i32
  }
}

</mosaic_0001>

<llo_original>
// kernel: tpu_custom_call.1
$region0: #{tpu_custom_call.1}
  #allocation0 [shape = 'u32[]', space=smem, size = 0x4, offset = 0x4, fixed_abs, tag = 'smem constant byte address 0x4 - core index']
  #allocation1 [shape = 'u32[144,128]{1,0:T(1,128)}', space=vmem, size = 0x12000, scoped, tag = 'internal scratch']
  %s0 = inlined_call_operand.vmem [shape: f32[16,128], index: 0, kind: input, shape index: {}]
  %s1 = inlined_call_operand.vmem [shape: f32[32,64], index: 1, kind: input, shape index: {}]
  %s2 = inlined_call_operand.vmem [shape: f32[72,64], index: 2, kind: input, shape index: {}]
  %s3 = inlined_call_operand.vmem [shape: f32[72,8], index: 3, kind: input, shape index: {}]
  %s4 = inlined_call_operand.vmem [shape: f32[20,8], index: 4, kind: input, shape index: {}]
  %s5 = inlined_call_operand.vmem [shape: f32[16,28], index: 5, kind: input, shape index: {}]
  %s6 = inlined_call_operand.vmem [shape: f32[4,48,8], index: 6, kind: input, shape index: {}]
  %s7 = inlined_call_operand.vmem [shape: f32[4,16,64], index: 7, kind: input, shape index: {}]
  %s8 = inlined_call_operand.hbm [shape: f32[16,128], index: 8, kind: output, shape index: {}]
  %s9 = sld [smem:[#allocation0]]
  $region42: #{tpu_custom_call.1} parent=0
    _
  %s11 = ssub.s32 1, %s9
  %s12 = scalar_select 0, %s11, %s9
  $region1: #{tpu_custom_call.1} parent=0
    #allocation2 [shape = 'u8[8192]{0}', space=vmem, size = 0x2000, scoped, tag = 'output window, operand 0, single buffered']
    #allocation3 [shape = 's32[1]{0}', space=sflag, size = 0x4, scoped, tag = 'scoped memory for tpu_custom_call.1']
    %13 = vsyncpa [#allocation3], 0
    // Predicated region
    $region2: #{tpu_custom_call.1} parent=1 // pred_check
      _
    $region3: #{tpu_custom_call.1} parent=1 // pred_check_branch
      %15 = sbr.rel (0) target = $region5
    $region4: #{tpu_custom_call.1} parent=1 // pred_region
      _
    $region5: #{tpu_custom_call.1} parent=1 // pred_fallthru
      _
    // Predicated region
    $region6: #{tpu_custom_call.1} parent=1 // pred_check
      _
    $region7: #{tpu_custom_call.1} parent=1 // pred_check_branch
      %17 = sbr.rel (0) target = $region9
    $region8: #{tpu_custom_call.1} parent=1 // pred_region
      _
    $region9: #{tpu_custom_call.1} parent=1 // pred_fallthru
      _
    // Predicated region
    $region10: #{tpu_custom_call.1} parent=1 // pred_check
      _
    $region11: #{tpu_custom_call.1} parent=1 // pred_check_branch
      %19 = sbr.rel (0) target = $region13
    $region12: #{tpu_custom_call.1} parent=1 // pred_region
      _
    $region13: #{tpu_custom_call.1} parent=1 // pred_fallthru
      _
    // Predicated region
    $region14: #{tpu_custom_call.1} parent=1 // pred_check
      _
    $region15: #{tpu_custom_call.1} parent=1 // pred_check_branch
      %21 = sbr.rel (0) target = $region17
    $region16: #{tpu_custom_call.1} parent=1 // pred_region
      _
    $region17: #{tpu_custom_call.1} parent=1 // pred_fallthru
      _
    // Predicated region
    $region18: #{tpu_custom_call.1} parent=1 // pred_check
      _
    $region19: #{tpu_custom_call.1} parent=1 // pred_check_branch
      %23 = sbr.rel (0) target = $region21
    $region20: #{tpu_custom_call.1} parent=1 // pred_region
      _
    $region21: #{tpu_custom_call.1} parent=1 // pred_fallthru
      _
    // Predicated region
    $region22: #{tpu_custom_call.1} parent=1 // pred_check
      _
    $region23: #{tpu_custom_call.1} parent=1 // pred_check_branch
      %25 = sbr.rel (0) target = $region25
    $region24: #{tpu_custom_call.1} parent=1 // pred_region
      _
    $region25: #{tpu_custom_call.1} parent=1 // pred_fallthru
      _
    // Predicated region
    $region26: #{tpu_custom_call.1} parent=1 // pred_check
      _
    $region27: #{tpu_custom_call.1} parent=1 // pred_check_branch
      %27 = sbr.rel (0) target = $region29
    $region28: #{tpu_custom_call.1} parent=1 // pred_region
      _
    $region29: #{tpu_custom_call.1} parent=1 // pred_fallthru
      _
    // Predicated region
    $region30: #{tpu_custom_call.1} parent=1 // pred_check
      _
    $region31: #{tpu_custom_call.1} parent=1 // pred_check_branch
      %29 = sbr.rel (0) target = $region33
    $region32: #{tpu_custom_call.1} parent=1 // pred_region
      _
    $region33: #{tpu_custom_call.1} parent=1 // pred_fallthru
      _
    %v30 = vld [vmem:[%s0] sm:$0xff]
    %v31 = vld [vmem:[%s0 + $0x8] sm:$0xff]
    %v32 = vld [vmem:[%s1] sm:$0xff]
    %v33 = vld [vmem:[%s1 + $0x8] sm:$0xff]
    %v34 = vld [vmem:[%s1 + $0x10] sm:$0xff]
    %v35 = vld [vmem:[%s1 + $0x18] sm:$0xff]
    %v36 = vld [vmem:[%s2] sm:$0xff]
    %v37 = vld [vmem:[%s2 + $0x8] sm:$0xff]
    %v38 = vld [vmem:[%s2 + $0x10] sm:$0xff]
    %v39 = vld [vmem:[%s2 + $0x18] sm:$0xff]
    %v40 = vld [vmem:[%s2 + $0x20] sm:$0xff]
    %v41 = vld [vmem:[%s2 + $0x28] sm:$0xff]
    %v42 = vld [vmem:[%s2 + $0x30] sm:$0xff]
    %v43 = vld [vmem:[%s2 + $0x38] sm:$0xff]
    %v44 = vld [vmem:[%s2 + $0x40] sm:$0xff]
    %v45 = vld [vmem:[%s3] sm:$0xff]
    %v46 = vld [vmem:[%s3 + $0x8] sm:$0xff]
    %v47 = vld [vmem:[%s3 + $0x10] sm:$0xff]
    %v48 = vld [vmem:[%s3 + $0x18] sm:$0xff]
    %v49 = vld [vmem:[%s3 + $0x20] sm:$0xff]
    %v50 = vld [vmem:[%s3 + $0x28] sm:$0xff]
    %v51 = vld [vmem:[%s3 + $0x30] sm:$0xff]
    %v52 = vld [vmem:[%s3 + $0x38] sm:$0xff]
    %v53 = vld [vmem:[%s3 + $0x40] sm:$0xff]
    %v54 = vlaneseq
    %v55 = vshrl.u32 %v54, 7
    %v56 = vsub.s32 0, %v55
    %v57 = vrot.slane %v44, %v56
    %vm58 = vcmask 261120
    %v60 = vsel %vm58, %v30, 0
    %v63 = vsel %vm58, %v31, 0
    %65 = vmatprep.subr.mxu0 0.0
    %66 = vmatpush1.msra.mxu0 0.0
    %67 = vmatprep.subr.mxu0 0.0
    %68 = vmatpush1.msra.mxu0 0.0
    %69 = vmatprep.subr.mxu0 0.0
    %70 = vmatpush1.msra.mxu0 0.0
    %71 = vmatprep.subr.mxu0 0.0
    %72 = vmatpush1.msra.mxu0 0.0
    %73 = vmatprep.subr.mxu0 0.0
    %74 = vmatpush1.msra.mxu0 0.0
    %75 = vmatprep.subr.mxu0 0.0
    %76 = vmatpush1.msra.mxu0 0.0
    %77 = vmatprep.subr.mxu0 0.0
    %78 = vmatpush1.msra.mxu0 0.0
    %79 = vmatprep.subr.mxu0 0.0
    %80 = vmatpush1.msra.mxu0 0.0
    %81 = vmatprep.subr.mxu0 0.0
    %82 = vmatpush1.msra.mxu0 0.0
    %83 = vmatprep.subr.mxu0 0.0
    %84 = vmatpush1.msra.mxu0 0.0
    %85 = vmatprep.subr.mxu0 0.0
    %86 = vmatpush1.msra.mxu0 0.0
    %87 = vmatprep.subr.mxu0 0.0
    %88 = vmatpush1.msra.mxu0 0.0
    %89 = vmatprep.subr.mxu0 0.0
    %90 = vmatpush1.msra.mxu0 %v35
    %91 = vmatprep.subr.mxu0 0.0
    %92 = vmatpush1.msra.mxu0 %v34
    %93 = vmatprep.subr.mxu0 0.0
    %94 = vmatpush1.msra.mxu0 %v33
    %95 = vmatprep.subr.mxu0 0.0
    %96 = vmatpush1.msra.mxu0 %v32
    %97 = vmatprep.subr.mxu0 0.0
    %98 = vmatpush2.msra.mxu0 0.0
    %99 = vmatprep.subr.mxu0 0.0
    %100 = vmatpush2.msra.mxu0 0.0
    %101 = vmatprep.subr.mxu0 0.0
    %102 = vmatpush2.msra.mxu0 0.0
    %103 = vmatprep.subr.mxu0 0.0
    %104 = vmatpush2.msra.mxu0 0.0
    %105 = vmatprep.subr.mxu0 0.0
    %106 = vmatpush2.msra.mxu0 0.0
    %107 = vmatprep.subr.mxu0 0.0
    %108 = vmatpush2.msra.mxu0 0.0
    %109 = vmatprep.subr.mxu0 0.0
    %110 = vmatpush2.msra.mxu0 0.0
    %111 = vmatprep.subr.mxu0 0.0
    %112 = vmatpush2.msra.mxu0 0.0
    %113 = vmatprep.subr.mxu0 0.0
    %114 = vmatpush2.msra.mxu0 0.0
    %115 = vmatprep.subr.mxu0 0.0
    %116 = vmatpush2.msra.mxu0 0.0
    %117 = vmatprep.subr.mxu0 0.0
    %118 = vmatpush2.msra.mxu0 0.0
    %119 = vmatprep.subr.mxu0 0.0
    %120 = vmatpush2.msra.mxu0 0.0
    %121 = vmatprep.subr.mxu0 0.0
    %122 = vmatpush2.msra.mxu0 0.0
    %123 = vmatprep.subr.mxu0 0.0
    %124 = vmatpush2.msra.mxu0 0.0
    %125 = vmatprep.subr.mxu0 0.0
    %126 = vmatpush2.msra.mxu0 0.0
    %127 = vmatprep.subr.mxu0 0.0
    %128 = vmatpush2.msra.mxu0 0.0
    %129 = vmatprep.mubr.f32.mxu0 0.0
    %130 = vmatmul.mubr.f32.gmra.mxu0 %v60
    %v131 = vpop.f32.mrf.mxu0
    %v132 = vadd.f32 %v57, %v131
    %v133 = vpop.f32.mrf.mxu0
    %134 = vmatprep.mubr.f32.mxu0 0.0
    %135 = vmatmul.mubr.f32.gmra.mxu0 %v63
    %v136 = vpop.f32.mrf.mxu0
    %v137 = vadd.f32 %v57, %v136
    %v138 = vpop.f32.mrf.mxu0
    %139 = vdwg.mxu0
    %v140 = vtanh.pop %v132
    %v141 = vtanh.pop %v137
    %v142 = vlaneseq
    %v143 = vshrl.u32 %v142, 7
    %v144 = vsub.s32 1, %v143
    %v145 = vrot.slane %v44, %v144
    %vm146 = vcmask 523264
    %v148 = vsel %vm146, %v140, 0
    %v151 = vsel %vm146, %v141, 0
    %153 = vmatprep.subr.mxu0 0.0
    %154 = vmatpush1.msra.mxu0 0.0
    %155 = vmatprep.subr.mxu0 0.0
    %156 = vmatpush1.msra.mxu0 0.0
    %157 = vmatprep.subr.mxu0 0.0
    %158 = vmatpush1.msra.mxu0 0.0
    %159 = vmatprep.subr.mxu0 0.0
    %160 = vmatpush1.msra.mxu0 0.0
    %161 = vmatprep.subr.mxu0 0.0
    %162 = vmatpush1.msra.mxu0 0.0
    %163 = vmatprep.subr.mxu0 0.0
    %164 = vmatpush1.msra.mxu0 0.0
    %165 = vmatprep.subr.mxu0 0.0
    %166 = vmatpush1.msra.mxu0 0.0
    %167 = vmatprep.subr.mxu0 0.0
    %168 = vmatpush1.msra.mxu0 0.0
    %169 = vmatprep.subr.mxu0 0.0
    %170 = vmatpush1.msra.mxu0 %v43
    %171 = vmatprep.subr.mxu0 0.0
    %172 = vmatpush1.msra.mxu0 %v42
    %173 = vmatprep.subr.mxu0 0.0
    %174 = vmatpush1.msra.mxu0 %v41
    %175 = vmatprep.subr.mxu0 0.0
    %176 = vmatpush1.msra.mxu0 %v40
    %177 = vmatprep.subr.mxu0 0.0
    %178 = vmatpush1.msra.mxu0 %v39
    %179 = vmatprep.subr.mxu0 0.0
    %180 = vmatpush1.msra.mxu0 %v38
    %181 = vmatprep.subr.mxu0 0.0
    %182 = vmatpush1.msra.mxu0 %v37
    %183 = vmatprep.subr.mxu0 0.0
    %184 = vmatpush1.msra.mxu0 %v36
    %185 = vmatprep.subr.mxu0 0.0
    %186 = vmatpush2.msra.mxu0 0.0
    %187 = vmatprep.subr.mxu0 0.0
    %188 = vmatpush2.msra.mxu0 0.0
    %189 = vmatprep.subr.mxu0 0.0
    %190 = vmatpush2.msra.mxu0 0.0
    %191 = vmatprep.subr.mxu0 0.0
    %192 = vmatpush2.msra.mxu0 0.0
    %193 = vmatprep.subr.mxu0 0.0
    %194 = vmatpush2.msra.mxu0 0.0
    %195 = vmatprep.subr.mxu0 0.0
    %196 = vmatpush2.msra.mxu0 0.0
    %197 = vmatprep.subr.mxu0 0.0
    %198 = vmatpush2.msra.mxu0 0.0
    %199 = vmatprep.subr.mxu0 0.0
    %200 = vmatpush2.msra.mxu0 0.0
    %201 = vmatprep.subr.mxu0 0.0
    %202 = vmatpush2.msra.mxu0 0.0
    %203 = vmatprep.subr.mxu0 0.0
    %204 = vmatpush2.msra.mxu0 0.0
    %205 = vmatprep.subr.mxu0 0.0
    %206 = vmatpush2.msra.mxu0 0.0
    %207 = vmatprep.subr.mxu0 0.0
    %208 = vmatpush2.msra.mxu0 0.0
    %209 = vmatprep.subr.mxu0 0.0
    %210 = vmatpush2.msra.mxu0 0.0
    %211 = vmatprep.subr.mxu0 0.0
    %212 = vmatpush2.msra.mxu0 0.0
    %213 = vmatprep.subr.mxu0 0.0
    %214 = vmatpush2.msra.mxu0 0.0
    %215 = vmatprep.subr.mxu0 0.0
    %216 = vmatpush2.msra.mxu0 0.0
    %217 = vmatprep.mubr.f32.mxu0 0.0
    %218 = vmatmul.mubr.f32.gmra.mxu0 %v148
    %v219 = vpop.f32.mrf.mxu0
    %v220 = vadd.f32 %v145, %v219
    %v221 = vpop.f32.mrf.mxu0
    %222 = vmatprep.mubr.f32.mxu0 0.0
    %223 = vmatmul.mubr.f32.gmra.mxu0 %v151
    %v224 = vpop.f32.mrf.mxu0
    %v225 = vadd.f32 %v145, %v224
    %v226 = vpop.f32.mrf.mxu0
    %227 = vdwg.mxu0
    %v228 = vtanh.pop %v220
    %v229 = vtanh.pop %v225
    %v230 = vlaneseq
    %v231 = vshrl.u32 %v230, 7
    %v232 = vsub.s32 0, %v231
    %v233 = vrot.slane %v53, %v232
    %v235 = vsel %vm146, %v228, 0
    %v238 = vsel %vm146, %v229, 0
    %240 = vmatprep.subr.mxu0 0.0
    %241 = vmatpush1.msra.mxu0 0.0
    %242 = vmatprep.subr.mxu0 0.0
    %243 = vmatpush1.msra.mxu0 0.0
    %244 = vmatprep.subr.mxu0 0.0
    %245 = vmatpush1.msra.mxu0 0.0
    %246 = vmatprep.subr.mxu0 0.0
    %247 = vmatpush1.msra.mxu0 0.0
    %248 = vmatprep.subr.mxu0 0.0
    %249 = vmatpush1.msra.mxu0 0.0
    %250 = vmatprep.subr.mxu0 0.0
    %251 = vmatpush1.msra.mxu0 0.0
    %252 = vmatprep.subr.mxu0 0.0
    %253 = vmatpush1.msra.mxu0 0.0
    %254 = vmatprep.subr.mxu0 0.0
    %255 = vmatpush1.msra.mxu0 0.0
    %256 = vmatprep.subr.mxu0 0.0
    %257 = vmatpush1.msra.mxu0 %v52
    %258 = vmatprep.subr.mxu0 0.0
    %259 = vmatpush1.msra.mxu0 %v51
    %260 = vmatprep.subr.mxu0 0.0
    %261 = vmatpush1.msra.mxu0 %v50
    %262 = vmatprep.subr.mxu0 0.0
    %263 = vmatpush1.msra.mxu0 %v49
    %264 = vmatprep.subr.mxu0 0.0
    %265 = vmatpush1.msra.mxu0 %v48
    %266 = vmatprep.subr.mxu0 0.0
    %267 = vmatpush1.msra.mxu0 %v47
    %268 = vmatprep.subr.mxu0 0.0
    %269 = vmatpush1.msra.mxu0 %v46
    %270 = vmatprep.subr.mxu0 0.0
    %271 = vmatpush1.msra.mxu0 %v45
    %272 = vmatprep.subr.mxu0 0.0
    %273 = vmatpush2.msra.mxu0 0.0
    %274 = vmatprep.subr.mxu0 0.0
    %275 = vmatpush2.msra.mxu0 0.0
    %276 = vmatprep.subr.mxu0 0.0
    %277 = vmatpush2.msra.mxu0 0.0
    %278 = vmatprep.subr.mxu0 0.0
    %279 = vmatpush2.msra.mxu0 0.0
    %280 = vmatprep.subr.mxu0 0.0
    %281 = vmatpush2.msra.mxu0 0.0
    %282 = vmatprep.subr.mxu0 0.0
    %283 = vmatpush2.msra.mxu0 0.0
    %284 = vmatprep.subr.mxu0 0.0
    %285 = vmatpush2.msra.mxu0 0.0
    %286 = vmatprep.subr.mxu0 0.0
    %287 = vmatpush2.msra.mxu0 0.0
    %288 = vmatprep.subr.mxu0 0.0
    %289 = vmatpush2.msra.mxu0 0.0
    %290 = vmatprep.subr.mxu0 0.0
    %291 = vmatpush2.msra.mxu0 0.0
    %292 = vmatprep.subr.mxu0 0.0
    %293 = vmatpush2.msra.mxu0 0.0
    %294 = vmatprep.subr.mxu0 0.0
    %295 = vmatpush2.msra.mxu0 0.0
    %296 = vmatprep.subr.mxu0 0.0
    %297 = vmatpush2.msra.mxu0 0.0
    %298 = vmatprep.subr.mxu0 0.0
    %299 = vmatpush2.msra.mxu0 0.0
    %300 = vmatprep.subr.mxu0 0.0
    %301 = vmatpush2.msra.mxu0 0.0
    %302 = vmatprep.subr.mxu0 0.0
    %303 = vmatpush2.msra.mxu0 0.0
    %304 = vmatprep.mubr.f32.mxu0 0.0
    %305 = vmatmul.mubr.f32.gmra.mxu0 %v235
    %v306 = vpop.f32.mrf.mxu0
    %v307 = vadd.f32 %v233, %v306
    %v308 = vpop.f32.mrf.mxu0
    %309 = vmatprep.mubr.f32.mxu0 0.0
    %310 = vmatmul.mubr.f32.gmra.mxu0 %v238
    %v311 = vpop.f32.mrf.mxu0
    %v312 = vadd.f32 %v233, %v311
    %v313 = vpop.f32.mrf.mxu0
    %314 = vdwg.mxu0
    %315 = vrot.lane.b32.xlu0 %v30, 96
    %v316 = vpop.permute.xlu0 %315
    %317 = vrot.lane.b32.xlu0 %v31, 96
    %v318 = vpop.permute.xlu0 %317
    %v321 = vsub.f32 %v307, %v316
    %v322 = vsub.f32 %v312, %v318
    %v323 = vsub.f32 0.0, %v321
    %v324 = vsub.f32 0.0, %v322
    %v325 = vxor.u32 %v323, 2147483648
    %v326 = vxor.u32 %v324, 2147483648
    %v327 = vmul.f32 %v325, 1.442695
    %v328 = vpow.pop %v327
    %v329 = vmul.f32 %v326, 1.442695
    %v330 = vpow.pop %v329
    %v331 = vadd.f32 %v328, 1.0
    %v332 = vadd.f32 %v330, 1.0
    %v333 = vrcp.pop %v331
    %v334 = vmul.f32 1.0, %v333
    %v335 = vrcp.pop %v332
    %v336 = vmul.f32 1.0, %v335
    %339 = vrot.lane.b32.xlu0 %v334, 124
    %v340 = vpop.permute.xlu0 %339
    %341 = vrot.lane.b32.xlu0 %v336, 124
    %v342 = vpop.permute.xlu0 %341
    %v345 = vmul.f32 %v307, %v340
    %v346 = vmul.f32 %v312, %v342
    %v347 = vsub.f32 1.0, %v334
    %v348 = vsub.f32 1.0, %v336
    %351 = vrot.lane.b32.xlu0 %v347, 28
    %v352 = vpop.permute.xlu0 %351
    %353 = vrot.lane.b32.xlu0 %v348, 28
    %v354 = vpop.permute.xlu0 %353
    %v357 = vmul.f32 %v30, %v352
    %v358 = vmul.f32 %v31, %v354
    %361 = vrot.lane.b32.xlu0 %v357, 96
    %v362 = vpop.permute.xlu0 %361
    %363 = vrot.lane.b32.xlu0 %v358, 96
    %v364 = vpop.permute.xlu0 %363
    %v367 = vadd.f32 %v345, %v362
    %v368 = vadd.f32 %v346, %v364
    %v369 = vmax.f32 %v307, %v316
    %v370 = vmax.f32 %v312, %v318
    %v371 = vadd.f32 %v307, %v316
    %v372 = vadd.f32 %v312, %v318
    %v373 = vsub.f32 %v307, %v369
    %v374 = vsub.f32 %v312, %v370
    %v375 = vmul.f32 %v373, 1.442695
    %v376 = vpow.pop %v375
    %v377 = vmul.f32 %v374, 1.442695
    %v378 = vpow.pop %v377
    %381 = vrot.lane.b32.xlu0 %v369, 32
    %v382 = vpop.permute.xlu0 %381
    %383 = vrot.lane.b32.xlu0 %v370, 32
    %v384 = vpop.permute.xlu0 %383
    %v387 = vsub.f32 %v30, %v382
    %v388 = vsub.f32 %v31, %v384
    %v389 = vmul.f32 %v387, 1.442695
    %v390 = vpow.pop %v389
    %v391 = vmul.f32 %v388, 1.442695
    %v392 = vpow.pop %v391
    %395 = vrot.lane.b32.xlu0 %v390, 96
    %v396 = vpop.permute.xlu0 %395
    %397 = vrot.lane.b32.xlu0 %v392, 96
    %v398 = vpop.permute.xlu0 %397
    %v401 = vadd.f32 %v376, %v396
    %v402 = vadd.f32 %v378, %v398
    %v403 = vlog2.pop %v401
    %v404 = vmul.f32 %v403, 0.6931472
    %v405 = vlog2.pop %v402
    %v406 = vmul.f32 %v405, 0.6931472
    %v407 = vadd.f32 %v369, %v404
    %v408 = vadd.f32 %v370, %v406
    %v409 = vsub.f32 %v371, %v407
    %v410 = vsub.f32 %v372, %v408
    %v411 = vmul.f32 %v409, 0.5
    %v412 = vmul.f32 %v410, 0.5
    %v413 = vmul.f32 %v411, 1.442695
    %v414 = vpow.pop %v413
    %v415 = vmul.f32 %v412, 1.442695
    %v416 = vpow.pop %v415
    %417 = vrot.lane.b32.xlu0 %v30, 92
    %v418 = vpop.permute.xlu0 %417
    %419 = vrot.lane.b32.xlu0 %v31, 92
    %v420 = vpop.permute.xlu0 %419
    %v423 = vmul.f32 %v414, %v418
    %v424 = vmul.f32 %v416, %v420
    %427 = vrot.lane.b32.xlu0 %v423, 124
    %v428 = vpop.permute.xlu0 %427
    %429 = vrot.lane.b32.xlu0 %v424, 124
    %v430 = vpop.permute.xlu0 %429
    %v433 = vadd.f32 %v367, %v428
    %v434 = vadd.f32 %v368, %v430
    %v435 = vld [vmem:[%s4] sm:$0xff]
    %v436 = vld [vmem:[%s4 + $0x8] sm:$0xff]
    %v437 = vld [vmem:[%s5] sm:$0xff]
    %v438 = vld [vmem:[%s5 + $0x8] sm:$0xff]
    %v439 = vlaneseq
    %v440 = vshrl.u32 %v439, 7
    %v441 = vsub.s32 4, %v440
    %v442 = vrot.slane %v436, %v441
    %vm443 = vcmask 31744
    %v445 = vsel %vm443, %v433, 0
    %v448 = vsel %vm443, %v434, 0
    %vm450 = vcmask 1043456
    %v452 = vsel %vm450, %v435, 0
    %454 = vmatprep.subr.mxu0 0.0
    %455 = vmatpush1.msra.mxu0 0.0
    %456 = vmatprep.subr.mxu0 0.0
    %457 = vmatpush1.msra.mxu0 0.0
    %458 = vmatprep.subr.mxu0 0.0
    %459 = vmatpush1.msra.mxu0 0.0
    %460 = vmatprep.subr.mxu0 0.0
    %461 = vmatpush1.msra.mxu0 0.0
    %462 = vmatprep.subr.mxu0 0.0
    %463 = vmatpush1.msra.mxu0 0.0
    %464 = vmatprep.subr.mxu0 0.0
    %465 = vmatpush1.msra.mxu0 0.0
    %466 = vmatprep.subr.mxu0 0.0
    %467 = vmatpush1.msra.mxu0 0.0
    %468 = vmatprep.subr.mxu0 0.0
    %469 = vmatpush1.msra.mxu0 0.0
    %470 = vmatprep.subr.mxu0 0.0
    %471 = vmatpush1.msra.mxu0 0.0
    %472 = vmatprep.subr.mxu0 0.0
    %473 = vmatpush1.msra.mxu0 0.0
    %474 = vmatprep.subr.mxu0 0.0
    %475 = vmatpush1.msra.mxu0 0.0
    %476 = vmatprep.subr.mxu0 0.0
    %477 = vmatpush1.msra.mxu0 0.0
    %478 = vmatprep.subr.mxu0 0.0
    %479 = vmatpush1.msra.mxu0 0.0
    %480 = vmatprep.subr.mxu0 0.0
    %481 = vmatpush1.msra.mxu0 0.0
    %482 = vmatprep.subr.mxu0 0.0
    %483 = vmatpush1.msra.mxu0 0.0
    %484 = vmatprep.subr.mxu0 0.0
    %485 = vmatpush1.msra.mxu0 %v452
    %486 = vmatprep.subr.mxu0 0.0
    %487 = vmatpush2.msra.mxu0 0.0
    %488 = vmatprep.subr.mxu0 0.0
    %489 = vmatpush2.msra.mxu0 0.0
    %490 = vmatprep.subr.mxu0 0.0
    %491 = vmatpush2.msra.mxu0 0.0
    %492 = vmatprep.subr.mxu0 0.0
    %493 = vmatpush2.msra.mxu0 0.0
    %494 = vmatprep.subr.mxu0 0.0
    %495 = vmatpush2.msra.mxu0 0.0
    %496 = vmatprep.subr.mxu0 0.0
    %497 = vmatpush2.msra.mxu0 0.0
    %498 = vmatprep.subr.mxu0 0.0
    %499 = vmatpush2.msra.mxu0 0.0
    %500 = vmatprep.subr.mxu0 0.0
    %501 = vmatpush2.msra.mxu0 0.0
    %502 = vmatprep.subr.mxu0 0.0
    %503 = vmatpush2.msra.mxu0 0.0
    %504 = vmatprep.subr.mxu0 0.0
    %505 = vmatpush2.msra.mxu0 0.0
    %506 = vmatprep.subr.mxu0 0.0
    %507 = vmatpush2.msra.mxu0 0.0
    %508 = vmatprep.subr.mxu0 0.0
    %509 = vmatpush2.msra.mxu0 0.0
    %510 = vmatprep.subr.mxu0 0.0
    %511 = vmatpush2.msra.mxu0 0.0
    %512 = vmatprep.subr.mxu0 0.0
    %513 = vmatpush2.msra.mxu0 0.0
    %514 = vmatprep.subr.mxu0 0.0
    %515 = vmatpush2.msra.mxu0 0.0
    %516 = vmatprep.subr.mxu0 0.0
    %517 = vmatpush2.msra.mxu0 0.0
    %518 = vmatprep.mubr.f32.mxu0 0.0
    %519 = vmatmul.mubr.f32.gmra.mxu0 %v445
    %v520 = vpop.f32.mrf.mxu0
    %v521 = vadd.f32 %v442, %v520
    %v522 = vpop.f32.mrf.mxu0
    %523 = vmatprep.mubr.f32.mxu0 0.0
    %524 = vmatmul.mubr.f32.gmra.mxu0 %v448
    %v525 = vpop.f32.mrf.mxu0
    %v526 = vadd.f32 %v442, %v525
    %v527 = vpop.f32.mrf.mxu0
    %528 = vdwg.mxu0
    %v529 = vmax.f32 %v521, 0.0
    %v530 = vmax.f32 %v526, 0.0
    %v531 = vlaneseq
    %v532 = vshrl.u32 %v531, 7
    %v533 = vsub.s32 5, %v532
    %v534 = vrot.slane %v436, %v533
    %v536 = vrot.slane %v435, 4
    %v537 = vrot.slane %v436, 4
    %v538 = vsel %vm450, %v536, %v537
    %vm540 = vcmask 64512
    %v542 = vsel %vm540, %v529, 0
    %v545 = vsel %vm540, %v530, 0
    %547 = vmatprep.subr.mxu0 0.0
    %548 = vmatpush1.msra.mxu0 0.0
    %549 = vmatprep.subr.mxu0 0.0
    %550 = vmatpush1.msra.mxu0 0.0
    %551 = vmatprep.subr.mxu0 0.0
    %552 = vmatpush1.msra.mxu0 0.0
    %553 = vmatprep.subr.mxu0 0.0
    %554 = vmatpush1.msra.mxu0 0.0
    %555 = vmatprep.subr.mxu0 0.0
    %556 = vmatpush1.msra.mxu0 0.0
    %557 = vmatprep.subr.mxu0 0.0
    %558 = vmatpush1.msra.mxu0 0.0
    %559 = vmatprep.subr.mxu0 0.0
    %560 = vmatpush1.msra.mxu0 0.0
    %561 = vmatprep.subr.mxu0 0.0
    %562 = vmatpush1.msra.mxu0 0.0
    %563 = vmatprep.subr.mxu0 0.0
    %564 = vmatpush1.msra.mxu0 0.0
    %565 = vmatprep.subr.mxu0 0.0
    %566 = vmatpush1.msra.mxu0 0.0
    %567 = vmatprep.subr.mxu0 0.0
    %568 = vmatpush1.msra.mxu0 0.0
    %569 = vmatprep.subr.mxu0 0.0
    %570 = vmatpush1.msra.mxu0 0.0
    %571 = vmatprep.subr.mxu0 0.0
    %572 = vmatpush1.msra.mxu0 0.0
    %573 = vmatprep.subr.mxu0 0.0
    %574 = vmatpush1.msra.mxu0 0.0
    %575 = vmatprep.subr.mxu0 0.0
    %576 = vmatpush1.msra.mxu0 0.0
    %577 = vmatprep.subr.mxu0 0.0
    %578 = vmatpush1.msra.mxu0 %v538
    %579 = vmatprep.subr.mxu0 0.0
    %580 = vmatpush2.msra.mxu0 0.0
    %581 = vmatprep.subr.mxu0 0.0
    %582 = vmatpush2.msra.mxu0 0.0
    %583 = vmatprep.subr.mxu0 0.0
    %584 = vmatpush2.msra.mxu0 0.0
    %585 = vmatprep.subr.mxu0 0.0
    %586 = vmatpush2.msra.mxu0 0.0
    %587 = vmatprep.subr.mxu0 0.0
    %588 = vmatpush2.msra.mxu0 0.0
    %589 = vmatprep.subr.mxu0 0.0
    %590 = vmatpush2.msra.mxu0 0.0
    %591 = vmatprep.subr.mxu0 0.0
    %592 = vmatpush2.msra.mxu0 0.0
    %593 = vmatprep.subr.mxu0 0.0
    %594 = vmatpush2.msra.mxu0 0.0
    %595 = vmatprep.subr.mxu0 0.0
    %596 = vmatpush2.msra.mxu0 0.0
    %597 = vmatprep.subr.mxu0 0.0
    %598 = vmatpush2.msra.mxu0 0.0
    %599 = vmatprep.subr.mxu0 0.0
    %600 = vmatpush2.msra.mxu0 0.0
    %601 = vmatprep.subr.mxu0 0.0
    %602 = vmatpush2.msra.mxu0 0.0
    %603 = vmatprep.subr.mxu0 0.0
    %604 = vmatpush2.msra.mxu0 0.0
    %605 = vmatprep.subr.mxu0 0.0
    %606 = vmatpush2.msra.mxu0 0.0
    %607 = vmatprep.subr.mxu0 0.0
    %608 = vmatpush2.msra.mxu0 0.0
    %609 = vmatprep.subr.mxu0 0.0
    %610 = vmatpush2.msra.mxu0 0.0
    %611 = vmatprep.mubr.f32.mxu0 0.0
    %612 = vmatmul.mubr.f32.gmra.mxu0 %v542
    %v613 = vpop.f32.mrf.mxu0
    %v614 = vadd.f32 %v534, %v613
    %v615 = vpop.f32.mrf.mxu0
    %616 = vmatprep.mubr.f32.mxu0 0.0
    %617 = vmatmul.mubr.f32.gmra.mxu0 %v545
    %v618 = vpop.f32.mrf.mxu0
    %v619 = vadd.f32 %v534, %v618
    %v620 = vpop.f32.mrf.mxu0
    %621 = vdwg.mxu0
    %v622 = vmax.f32 %v614, 0.0
    %v623 = vmax.f32 %v619, 0.0
    %v624 = vlaneseq
    %v625 = vshrl.u32 %v624, 7
    %v626 = vsub.s32 0, %v625
    %v627 = vrot.slane %v438, %v626
    %v629 = vsel %vm540, %v622, 0
    %v632 = vsel %vm540, %v623, 0
    %634 = vmatprep.subr.mxu0 0.0
    %635 = vmatpush1.msra.mxu0 0.0
    %636 = vmatprep.subr.mxu0 0.0
    %637 = vmatpush1.msra.mxu0 0.0
    %638 = vmatprep.subr.mxu0 0.0
    %639 = vmatpush1.msra.mxu0 0.0
    %640 = vmatprep.subr.mxu0 0.0
    %641 = vmatpush1.msra.mxu0 0.0
    %642 = vmatprep.subr.mxu0 0.0
    %643 = vmatpush1.msra.mxu0 0.0
    %644 = vmatprep.subr.mxu0 0.0
    %645 = vmatpush1.msra.mxu0 0.0
    %646 = vmatprep.subr.mxu0 0.0
    %647 = vmatpush1.msra.mxu0 0.0
    %648 = vmatprep.subr.mxu0 0.0
    %649 = vmatpush1.msra.mxu0 0.0
    %650 = vmatprep.subr.mxu0 0.0
    %651 = vmatpush1.msra.mxu0 0.0
    %652 = vmatprep.subr.mxu0 0.0
    %653 = vmatpush1.msra.mxu0 0.0
    %654 = vmatprep.subr.mxu0 0.0
    %655 = vmatpush1.msra.mxu0 0.0
    %656 = vmatprep.subr.mxu0 0.0
    %657 = vmatpush1.msra.mxu0 0.0
    %658 = vmatprep.subr.mxu0 0.0
    %659 = vmatpush1.msra.mxu0 0.0
    %660 = vmatprep.subr.mxu0 0.0
    %661 = vmatpush1.msra.mxu0 0.0
    %662 = vmatprep.subr.mxu0 0.0
    %663 = vmatpush1.msra.mxu0 0.0
    %664 = vmatprep.subr.mxu0 0.0
    %665 = vmatpush1.msra.mxu0 %v437
    %666 = vmatprep.subr.mxu0 0.0
    %667 = vmatpush2.msra.mxu0 0.0
    %668 = vmatprep.subr.mxu0 0.0
    %669 = vmatpush2.msra.mxu0 0.0
    %670 = vmatprep.subr.mxu0 0.0
    %671 = vmatpush2.msra.mxu0 0.0
    %672 = vmatprep.subr.mxu0 0.0
    %673 = vmatpush2.msra.mxu0 0.0
    %674 = vmatprep.subr.mxu0 0.0
    %675 = vmatpush2.msra.mxu0 0.0
    %676 = vmatprep.subr.mxu0 0.0
    %677 = vmatpush2.msra.mxu0 0.0
    %678 = vmatprep.subr.mxu0 0.0
    %679 = vmatpush2.msra.mxu0 0.0
    %680 = vmatprep.subr.mxu0 0.0
    %681 = vmatpush2.msra.mxu0 0.0
    %682 = vmatprep.subr.mxu0 0.0
    %683 = vmatpush2.msra.mxu0 0.0
    %684 = vmatprep.subr.mxu0 0.0
    %685 = vmatpush2.msra.mxu0 0.0
    %686 = vmatprep.subr.mxu0 0.0
    %687 = vmatpush2.msra.mxu0 0.0
    %688 = vmatprep.subr.mxu0 0.0
    %689 = vmatpush2.msra.mxu0 0.0
    %690 = vmatprep.subr.mxu0 0.0
    %691 = vmatpush2.msra.mxu0 0.0
    %692 = vmatprep.subr.mxu0 0.0
    %693 = vmatpush2.msra.mxu0 0.0
    %694 = vmatprep.subr.mxu0 0.0
    %695 = vmatpush2.msra.mxu0 0.0
    %696 = vmatprep.subr.mxu0 0.0
    %697 = vmatpush2.msra.mxu0 0.0
    %698 = vmatprep.mubr.f32.mxu0 0.0
    %699 = vmatmul.mubr.f32.gmra.mxu0 %v629
    %v700 = vpop.f32.mrf.mxu0
    %v701 = vadd.f32 %v627, %v700
    %v702 = vpop.f32.mrf.mxu0
    %703 = vmatprep.mubr.f32.mxu0 0.0
    %704 = vmatmul.mubr.f32.gmra.mxu0 %v632
    %v705 = vpop.f32.mrf.mxu0
    %v706 = vadd.f32 %v627, %v705
    %v707 = vpop.f32.mrf.mxu0
    %708 = vdwg.mxu0
    %711 = vrot.lane.b32.xlu0 %v701, 4
    %v712 = vpop.permute.xlu0 %711
    %713 = vrot.lane.b32.xlu0 %v706, 4
    %v714 = vpop.permute.xlu0 %713
    %v717 = vsel %vm443, %v433, %v712
    %v718 = vsel %vm443, %v434, %v714
    %v719 = vld [vmem:[%s6] sm:$0xff]
    %v720 = vld [vmem:[%s6 + $0x8] sm:$0xff]
    %v721 = vld [vmem:[%s6 + $0x10] sm:$0xff]
    %v722 = vld [vmem:[%s6 + $0x18] sm:$0xff]
    %v723 = vld [vmem:[%s6 + $0x20] sm:$0xff]
    %v724 = vld [vmem:[%s6 + $0x28] sm:$0xff]
    %v725 = vld [vmem:[%s6 + $0x30] sm:$0xff]
    %v726 = vld [vmem:[%s6 + $0x38] sm:$0xff]
    %v727 = vld [vmem:[%s6 + $0x40] sm:$0xff]
    %v728 = vld [vmem:[%s6 + $0x48] sm:$0xff]
    %v729 = vld [vmem:[%s6 + $0x50] sm:$0xff]
    %v730 = vld [vmem:[%s6 + $0x58] sm:$0xff]
    %v731 = vld [vmem:[%s6 + $0x60] sm:$0xff]
    %v732 = vld [vmem:[%s6 + $0x68] sm:$0xff]
    %v733 = vld [vmem:[%s6 + $0x70] sm:$0xff]
    %v734 = vld [vmem:[%s6 + $0x78] sm:$0xff]
    %v735 = vld [vmem:[%s6 + $0x80] sm:$0xff]
    %v736 = vld [vmem:[%s6 + $0x88] sm:$0xff]
    %v737 = vld [vmem:[%s6 + $0x90] sm:$0xff]
    %v738 = vld [vmem:[%s6 + $0x98] sm:$0xff]
    %v739 = vld [vmem:[%s6 + $0xa0] sm:$0xff]
    %v740 = vld [vmem:[%s6 + $0xa8] sm:$0xff]
    %v741 = vld [vmem:[%s6 + $0xb0] sm:$0xff]
    %v742 = vld [vmem:[%s6 + $0xb8] sm:$0xff]
    %v743 = vld [vmem:[%s7] sm:$0xff]
    %v744 = vld [vmem:[%s7 + $0x8] sm:$0xff]
    %v745 = vld [vmem:[%s7 + $0x10] sm:$0xff]
    %v746 = vld [vmem:[%s7 + $0x18] sm:$0xff]
    %v747 = vld [vmem:[%s7 + $0x20] sm:$0xff]
    %v748 = vld [vmem:[%s7 + $0x28] sm:$0xff]
    %v749 = vld [vmem:[%s7 + $0x30] sm:$0xff]
    %v750 = vld [vmem:[%s7 + $0x38] sm:$0xff]
    %v751 = vlaneseq
    %v752 = vshrl.u32 %v751, 7
    %v753 = vsub.s32 0, %v752
    %v754 = vrot.slane %v724, %v753
    %v756 = vsel %vm58, %v717, 0
    %v759 = vsel %vm58, %v718, 0
    %761 = vmatprep.subr.mxu0 0.0
    %762 = vmatpush1.msra.mxu0 0.0
    %763 = vmatprep.subr.mxu0 0.0
    %764 = vmatpush1.msra.mxu0 0.0
    %765 = vmatprep.subr.mxu0 0.0
    %766 = vmatpush1.msra.mxu0 0.0
    %767 = vmatprep.subr.mxu0 0.0
    %768 = vmatpush1.msra.mxu0 0.0
    %769 = vmatprep.subr.mxu0 0.0
    %770 = vmatpush1.msra.mxu0 0.0
    %771 = vmatprep.subr.mxu0 0.0
    %772 = vmatpush1.msra.mxu0 0.0
    %773 = vmatprep.subr.mxu0 0.0
    %774 = vmatpush1.msra.mxu0 0.0
    %775 = vmatprep.subr.mxu0 0.0
    %776 = vmatpush1.msra.mxu0 0.0
    %777 = vmatprep.subr.mxu0 0.0
    %778 = vmatpush1.msra.mxu0 0.0
    %779 = vmatprep.subr.mxu0 0.0
    %780 = vmatpush1.msra.mxu0 0.0
    %781 = vmatprep.subr.mxu0 0.0
    %782 = vmatpush1.msra.mxu0 0.0
    %783 = vmatprep.subr.mxu0 0.0
    %784 = vmatpush1.msra.mxu0 0.0
    %785 = vmatprep.subr.mxu0 0.0
    %786 = vmatpush1.msra.mxu0 %v722
    %787 = vmatprep.subr.mxu0 0.0
    %788 = vmatpush1.msra.mxu0 %v721
    %789 = vmatprep.subr.mxu0 0.0
    %790 = vmatpush1.msra.mxu0 %v720
    %791 = vmatprep.subr.mxu0 0.0
    %792 = vmatpush1.msra.mxu0 %v719
    %793 = vmatprep.subr.mxu0 0.0
    %794 = vmatpush2.msra.mxu0 0.0
    %795 = vmatprep.subr.mxu0 0.0
    %796 = vmatpush2.msra.mxu0 0.0
    %797 = vmatprep.subr.mxu0 0.0
    %798 = vmatpush2.msra.mxu0 0.0
    %799 = vmatprep.subr.mxu0 0.0
    %800 = vmatpush2.msra.mxu0 0.0
    %801 = vmatprep.subr.mxu0 0.0
    %802 = vmatpush2.msra.mxu0 0.0
    %803 = vmatprep.subr.mxu0 0.0
    %804 = vmatpush2.msra.mxu0 0.0
    %805 = vmatprep.subr.mxu0 0.0
    %806 = vmatpush2.msra.mxu0 0.0
    %807 = vmatprep.subr.mxu0 0.0
    %808 = vmatpush2.msra.mxu0 0.0
    %809 = vmatprep.subr.mxu0 0.0
    %810 = vmatpush2.msra.mxu0 0.0
    %811 = vmatprep.subr.mxu0 0.0
    %812 = vmatpush2.msra.mxu0 0.0
    %813 = vmatprep.subr.mxu0 0.0
    %814 = vmatpush2.msra.mxu0 0.0
    %815 = vmatprep.subr.mxu0 0.0
    %816 = vmatpush2.msra.mxu0 0.0
    %817 = vmatprep.subr.mxu0 0.0
    %818 = vmatpush2.msra.mxu0 0.0
    %819 = vmatprep.subr.mxu0 0.0
    %820 = vmatpush2.msra.mxu0 0.0
    %821 = vmatprep.subr.mxu0 0.0
    %822 = vmatpush2.msra.mxu0 0.0
    %823 = vmatprep.subr.mxu0 0.0
    %824 = vmatpush2.msra.mxu0 0.0
    %825 = vmatprep.mubr.f32.mxu0 0.0
    %826 = vmatmul.mubr.f32.gmra.mxu0 %v756
    %v827 = vpop.f32.mrf.mxu0
    %v828 = vadd.f32 %v754, %v827
    %v829 = vpop.f32.mrf.mxu0
    %830 = vmatprep.mubr.f32.mxu0 0.0
    %831 = vmatmul.mubr.f32.gmra.mxu0 %v759
    %v832 = vpop.f32.mrf.mxu0
    %v833 = vadd.f32 %v754, %v832
    %v834 = vpop.f32.mrf.mxu0
    %835 = vdwg.mxu0
    %v836 = vmax.f32 %v828, 0.0
    %v837 = vmax.f32 %v833, 0.0
    %v838 = vlaneseq
    %v839 = vshrl.u32 %v838, 7
    %v840 = vsub.s32 1, %v839
    %v841 = vrot.slane %v724, %v840
    %v843 = vsel %vm540, %v836, 0
    %v846 = vsel %vm540, %v837, 0
    %848 = vmatprep.subr.mxu0 0.0
    %849 = vmatpush1.msra.mxu0 0.0
    %850 = vmatprep.subr.mxu0 0.0
    %851 = vmatpush1.msra.mxu0 0.0
    %852 = vmatprep.subr.mxu0 0.0
    %853 = vmatpush1.msra.mxu0 0.0
    %854 = vmatprep.subr.mxu0 0.0
    %855 = vmatpush1.msra.mxu0 0.0
    %856 = vmatprep.subr.mxu0 0.0
    %857 = vmatpush1.msra.mxu0 0.0
    %858 = vmatprep.subr.mxu0 0.0
    %859 = vmatpush1.msra.mxu0 0.0
    %860 = vmatprep.subr.mxu0 0.0
    %861 = vmatpush1.msra.mxu0 0.0
    %862 = vmatprep.subr.mxu0 0.0
    %863 = vmatpush1.msra.mxu0 0.0
    %864 = vmatprep.subr.mxu0 0.0
    %865 = vmatpush1.msra.mxu0 0.0
    %866 = vmatprep.subr.mxu0 0.0
    %867 = vmatpush1.msra.mxu0 0.0
    %868 = vmatprep.subr.mxu0 0.0
    %869 = vmatpush1.msra.mxu0 0.0
    %870 = vmatprep.subr.mxu0 0.0
    %871 = vmatpush1.msra.mxu0 0.0
    %872 = vmatprep.subr.mxu0 0.0
    %873 = vmatpush1.msra.mxu0 0.0
    %874 = vmatprep.subr.mxu0 0.0
    %875 = vmatpush1.msra.mxu0 0.0
    %876 = vmatprep.subr.mxu0 0.0
    %877 = vmatpush1.msra.mxu0 0.0
    %878 = vmatprep.subr.mxu0 0.0
    %879 = vmatpush1.msra.mxu0 %v723
    %880 = vmatprep.subr.mxu0 0.0
    %881 = vmatpush2.msra.mxu0 0.0
    %882 = vmatprep.subr.mxu0 0.0
    %883 = vmatpush2.msra.mxu0 0.0
    %884 = vmatprep.subr.mxu0 0.0
    %885 = vmatpush2.msra.mxu0 0.0
    %886 = vmatprep.subr.mxu0 0.0
    %887 = vmatpush2.msra.mxu0 0.0
    %888 = vmatprep.subr.mxu0 0.0
    %889 = vmatpush2.msra.mxu0 0.0
    %890 = vmatprep.subr.mxu0 0.0
    %891 = vmatpush2.msra.mxu0 0.0
    %892 = vmatprep.subr.mxu0 0.0
    %893 = vmatpush2.msra.mxu0 0.0
    %894 = vmatprep.subr.mxu0 0.0
    %895 = vmatpush2.msra.mxu0 0.0
    %896 = vmatprep.subr.mxu0 0.0
    %897 = vmatpush2.msra.mxu0 0.0
    %898 = vmatprep.subr.mxu0 0.0
    %899 = vmatpush2.msra.mxu0 0.0
    %900 = vmatprep.subr.mxu0 0.0
    %901 = vmatpush2.msra.mxu0 0.0
    %902 = vmatprep.subr.mxu0 0.0
    %903 = vmatpush2.msra.mxu0 0.0
    %904 = vmatprep.subr.mxu0 0.0
    %905 = vmatpush2.msra.mxu0 0.0
    %906 = vmatprep.subr.mxu0 0.0
    %907 = vmatpush2.msra.mxu0 0.0
    %908 = vmatprep.subr.mxu0 0.0
    %909 = vmatpush2.msra.mxu0 0.0
    %910 = vmatprep.subr.mxu0 0.0
    %911 = vmatpush2.msra.mxu0 0.0
    %912 = vmatprep.mubr.f32.mxu0 0.0
    %913 = vmatmul.mubr.f32.gmra.mxu0 %v843
    %v914 = vpop.f32.mrf.mxu0
    %v915 = vadd.f32 %v841, %v914
    %v916 = vpop.f32.mrf.mxu0
    %917 = vmatprep.mubr.f32.mxu0 0.0
    %918 = vmatmul.mubr.f32.gmra.mxu0 %v846
    %v919 = vpop.f32.mrf.mxu0
    %v920 = vadd.f32 %v841, %v919
    %v921 = vpop.f32.mrf.mxu0
    %922 = vdwg.mxu0
    %v923 = vmax.f32 %v915, 0.0
    %v924 = vmax.f32 %v920, 0.0
    %v925 = vlaneseq
    %v926 = vshrl.u32 %v925, 7
    %v927 = vsub.s32 0, %v926
    %v928 = vrot.slane %v744, %v927
    %v930 = vsel %vm540, %v923, 0
    %v933 = vsel %vm540, %v924, 0
    %935 = vmatprep.subr.mxu0 0.0
    %936 = vmatpush1.msra.mxu0 0.0
    %937 = vmatprep.subr.mxu0 0.0
    %938 = vmatpush1.msra.mxu0 0.0
    %939 = vmatprep.subr.mxu0 0.0
    %940 = vmatpush1.msra.mxu0 0.0
    %941 = vmatprep.subr.mxu0 0.0
    %942 = vmatpush1.msra.mxu0 0.0
    %943 = vmatprep.subr.mxu0 0.0
    %944 = vmatpush1.msra.mxu0 0.0
    %945 = vmatprep.subr.mxu0 0.0
    %946 = vmatpush1.msra.mxu0 0.0
    %947 = vmatprep.subr.mxu0 0.0
    %948 = vmatpush1.msra.mxu0 0.0
    %949 = vmatprep.subr.mxu0 0.0
    %950 = vmatpush1.msra.mxu0 0.0
    %951 = vmatprep.subr.mxu0 0.0
    %952 = vmatpush1.msra.mxu0 0.0
    %953 = vmatprep.subr.mxu0 0.0
    %954 = vmatpush1.msra.mxu0 0.0
    %955 = vmatprep.subr.mxu0 0.0
    %956 = vmatpush1.msra.mxu0 0.0
    %957 = vmatprep.subr.mxu0 0.0
    %958 = vmatpush1.msra.mxu0 0.0
    %959 = vmatprep.subr.mxu0 0.0
    %960 = vmatpush1.msra.mxu0 0.0
    %961 = vmatprep.subr.mxu0 0.0
    %962 = vmatpush1.msra.mxu0 0.0
    %963 = vmatprep.subr.mxu0 0.0
    %964 = vmatpush1.msra.mxu0 0.0
    %965 = vmatprep.subr.mxu0 0.0
    %966 = vmatpush1.msra.mxu0 %v743
    %967 = vmatprep.subr.mxu0 0.0
    %968 = vmatpush2.msra.mxu0 0.0
    %969 = vmatprep.subr.mxu0 0.0
    %970 = vmatpush2.msra.mxu0 0.0
    %971 = vmatprep.subr.mxu0 0.0
    %972 = vmatpush2.msra.mxu0 0.0
    %973 = vmatprep.subr.mxu0 0.0
    %974 = vmatpush2.msra.mxu0 0.0
    %975 = vmatprep.subr.mxu0 0.0
    %976 = vmatpush2.msra.mxu0 0.0
    %977 = vmatprep.subr.mxu0 0.0
    %978 = vmatpush2.msra.mxu0 0.0
    %979 = vmatprep.subr.mxu0 0.0
    %980 = vmatpush2.msra.mxu0 0.0
    %981 = vmatprep.subr.mxu0 0.0
    %982 = vmatpush2.msra.mxu0 0.0
    %983 = vmatprep.subr.mxu0 0.0
    %984 = vmatpush2.msra.mxu0 0.0
    %985 = vmatprep.subr.mxu0 0.0
    %986 = vmatpush2.msra.mxu0 0.0
    %987 = vmatprep.subr.mxu0 0.0
    %988 = vmatpush2.msra.mxu0 0.0
    %989 = vmatprep.subr.mxu0 0.0
    %990 = vmatpush2.msra.mxu0 0.0
    %991 = vmatprep.subr.mxu0 0.0
    %992 = vmatpush2.msra.mxu0 0.0
    %993 = vmatprep.subr.mxu0 0.0
    %994 = vmatpush2.msra.mxu0 0.0
    %995 = vmatprep.subr.mxu0 0.0
    %996 = vmatpush2.msra.mxu0 0.0
    %997 = vmatprep.subr.mxu0 0.0
    %998 = vmatpush2.msra.mxu0 0.0
    %999 = vmatprep.mubr.f32.mxu0 0.0
    %1000 = vmatmul.mubr.f32.gmra.mxu0 %v930
    %v1001 = vpop.f32.mrf.mxu0
    %v1002 = vadd.f32 %v928, %v1001
    %v1003 = vpop.f32.mrf.mxu0
    %1004 = vmatprep.mubr.f32.mxu0 0.0
    %1005 = vmatmul.mubr.f32.gmra.mxu0 %v933
    %v1006 = vpop.f32.mrf.mxu0
    %v1007 = vadd.f32 %v928, %v1006
    %v1008 = vpop.f32.mrf.mxu0
    %1009 = vdwg.mxu0
    %v1010 = vmul.f32 %v1002, 1.442695
    %v1011 = vpow.pop %v1010
    %v1012 = vmul.f32 %v1007, 1.442695
    %v1013 = vpow.pop %v1012
    %v1014 = vmul.f32 %v717, %v1011
    %v1015 = vmul.f32 %v718, %v1013
    %1018 = vrot.lane.b32.xlu0 %v1002, 96
    %v1019 = vpop.permute.xlu0 %1018
    %1020 = vrot.lane.b32.xlu0 %v1007, 96
    %v1021 = vpop.permute.xlu0 %1020
    %v1024 = vadd.f32 %v1014, %v1019
    %v1025 = vadd.f32 %v1015, %v1021
    %v1026 = vlaneseq
    %v1027 = vshrl.u32 %v1026, 7
    %v1028 = vsub.s32 0, %v1027
    %v1029 = vrot.slane %v730, %v1028
    %v1031 = vsel %vm58, %v1024, 0
    %v1034 = vsel %vm58, %v1025, 0
    %1036 = vmatprep.subr.mxu0 0.0
    %1037 = vmatpush1.msra.mxu0 0.0
    %1038 = vmatprep.subr.mxu0 0.0
    %1039 = vmatpush1.msra.mxu0 0.0
    %1040 = vmatprep.subr.mxu0 0.0
    %1041 = vmatpush1.msra.mxu0 0.0
    %1042 = vmatprep.subr.mxu0 0.0
    %1043 = vmatpush1.msra.mxu0 0.0
    %1044 = vmatprep.subr.mxu0 0.0
    %1045 = vmatpush1.msra.mxu0 0.0
    %1046 = vmatprep.subr.mxu0 0.0
    %1047 = vmatpush1.msra.mxu0 0.0
    %1048 = vmatprep.subr.mxu0 0.0
    %1049 = vmatpush1.msra.mxu0 0.0
    %1050 = vmatprep.subr.mxu0 0.0
    %1051 = vmatpush1.msra.mxu0 0.0
    %1052 = vmatprep.subr.mxu0 0.0
    %1053 = vmatpush1.msra.mxu0 0.0
    %1054 = vmatprep.subr.mxu0 0.0
    %1055 = vmatpush1.msra.mxu0 0.0
    %1056 = vmatprep.subr.mxu0 0.0
    %1057 = vmatpush1.msra.mxu0 0.0
    %1058 = vmatprep.subr.mxu0 0.0
    %1059 = vmatpush1.msra.mxu0 0.0
    %1060 = vmatprep.subr.mxu0 0.0
    %1061 = vmatpush1.msra.mxu0 %v728
    %1062 = vmatprep.subr.mxu0 0.0
    %1063 = vmatpush1.msra.mxu0 %v727
    %1064 = vmatprep.subr.mxu0 0.0
    %1065 = vmatpush1.msra.mxu0 %v726
    %1066 = vmatprep.subr.mxu0 0.0
    %1067 = vmatpush1.msra.mxu0 %v725
    %1068 = vmatprep.subr.mxu0 0.0
    %1069 = vmatpush2.msra.mxu0 0.0
    %1070 = vmatprep.subr.mxu0 0.0
    %1071 = vmatpush2.msra.mxu0 0.0
    %1072 = vmatprep.subr.mxu0 0.0
    %1073 = vmatpush2.msra.mxu0 0.0
    %1074 = vmatprep.subr.mxu0 0.0
    %1075 = vmatpush2.msra.mxu0 0.0
    %1076 = vmatprep.subr.mxu0 0.0
    %1077 = vmatpush2.msra.mxu0 0.0
    %1078 = vmatprep.subr.mxu0 0.0
    %1079 = vmatpush2.msra.mxu0 0.0
    %1080 = vmatprep.subr.mxu0 0.0
    %1081 = vmatpush2.msra.mxu0 0.0
    %1082 = vmatprep.subr.mxu0 0.0
    %1083 = vmatpush2.msra.mxu0 0.0
    %1084 = vmatprep.subr.mxu0 0.0
    %1085 = vmatpush2.msra.mxu0 0.0
    %1086 = vmatprep.subr.mxu0 0.0
    %1087 = vmatpush2.msra.mxu0 0.0
    %1088 = vmatprep.subr.mxu0 0.0
    %1089 = vmatpush2.msra.mxu0 0.0
    %1090 = vmatprep.subr.mxu0 0.0
    %1091 = vmatpush2.msra.mxu0 0.0
    %1092 = vmatprep.subr.mxu0 0.0
    %1093 = vmatpush2.msra.mxu0 0.0
    %1094 = vmatprep.subr.mxu0 0.0
    %1095 = vmatpush2.msra.mxu0 0.0
    %1096 = vmatprep.subr.mxu0 0.0
    %1097 = vmatpush2.msra.mxu0 0.0
    %1098 = vmatprep.subr.mxu0 0.0
    %1099 = vmatpush2.msra.mxu0 0.0
    %1100 = vmatprep.mubr.f32.mxu0 0.0
    %1101 = vmatmul.mubr.f32.gmra.mxu0 %v1031
    %v1102 = vpop.f32.mrf.mxu0
    %v1103 = vadd.f32 %v1029, %v1102
    %v1104 = vpop.f32.mrf.mxu0
    %1105 = vmatprep.mubr.f32.mxu0 0.0
    %1106 = vmatmul.mubr.f32.gmra.mxu0 %v1034
    %v1107 = vpop.f32.mrf.mxu0
    %v1108 = vadd.f32 %v1029, %v1107
    %v1109 = vpop.f32.mrf.mxu0
    %1110 = vdwg.mxu0
    %v1111 = vmax.f32 %v1103, 0.0
    %v1112 = vmax.f32 %v1108, 0.0
    %v1113 = vlaneseq
    %v1114 = vshrl.u32 %v1113, 7
    %v1115 = vsub.s32 1, %v1114
    %v1116 = vrot.slane %v730, %v1115
    %v1118 = vsel %vm540, %v1111, 0
    %v1121 = vsel %vm540, %v1112, 0
    %1123 = vmatprep.subr.mxu0 0.0
    %1124 = vmatpush1.msra.mxu0 0.0
    %1125 = vmatprep.subr.mxu0 0.0
    %1126 = vmatpush1.msra.mxu0 0.0
    %1127 = vmatprep.subr.mxu0 0.0
    %1128 = vmatpush1.msra.mxu0 0.0
    %1129 = vmatprep.subr.mxu0 0.0
    %1130 = vmatpush1.msra.mxu0 0.0
    %1131 = vmatprep.subr.mxu0 0.0
    %1132 = vmatpush1.msra.mxu0 0.0
    %1133 = vmatprep.subr.mxu0 0.0
    %1134 = vmatpush1.msra.mxu0 0.0
    %1135 = vmatprep.subr.mxu0 0.0
    %1136 = vmatpush1.msra.mxu0 0.0
    %1137 = vmatprep.subr.mxu0 0.0
    %1138 = vmatpush1.msra.mxu0 0.0
    %1139 = vmatprep.subr.mxu0 0.0
    %1140 = vmatpush1.msra.mxu0 0.0
    %1141 = vmatprep.subr.mxu0 0.0
    %1142 = vmatpush1.msra.mxu0 0.0
    %1143 = vmatprep.subr.mxu0 0.0
    %1144 = vmatpush1.msra.mxu0 0.0
    %1145 = vmatprep.subr.mxu0 0.0
    %1146 = vmatpush1.msra.mxu0 0.0
    %1147 = vmatprep.subr.mxu0 0.0
    %1148 = vmatpush1.msra.mxu0 0.0
    %1149 = vmatprep.subr.mxu0 0.0
    %1150 = vmatpush1.msra.mxu0 0.0
    %1151 = vmatprep.subr.mxu0 0.0
    %1152 = vmatpush1.msra.mxu0 0.0
    %1153 = vmatprep.subr.mxu0 0.0
    %1154 = vmatpush1.msra.mxu0 %v729
    %1155 = vmatprep.subr.mxu0 0.0
    %1156 = vmatpush2.msra.mxu0 0.0
    %1157 = vmatprep.subr.mxu0 0.0
    %1158 = vmatpush2.msra.mxu0 0.0
    %1159 = vmatprep.subr.mxu0 0.0
    %1160 = vmatpush2.msra.mxu0 0.0
    %1161 = vmatprep.subr.mxu0 0.0
    %1162 = vmatpush2.msra.mxu0 0.0
    %1163 = vmatprep.subr.mxu0 0.0
    %1164 = vmatpush2.msra.mxu0 0.0
    %1165 = vmatprep.subr.mxu0 0.0
    %1166 = vmatpush2.msra.mxu0 0.0
    %1167 = vmatprep.subr.mxu0 0.0
    %1168 = vmatpush2.msra.mxu0 0.0
    %1169 = vmatprep.subr.mxu0 0.0
    %1170 = vmatpush2.msra.mxu0 0.0
    %1171 = vmatprep.subr.mxu0 0.0
    %1172 = vmatpush2.msra.mxu0 0.0
    %1173 = vmatprep.subr.mxu0 0.0
    %1174 = vmatpush2.msra.mxu0 0.0
    %1175 = vmatprep.subr.mxu0 0.0
    %1176 = vmatpush2.msra.mxu0 0.0
    %1177 = vmatprep.subr.mxu0 0.0
    %1178 = vmatpush2.msra.mxu0 0.0
    %1179 = vmatprep.subr.mxu0 0.0
    %1180 = vmatpush2.msra.mxu0 0.0
    %1181 = vmatprep.subr.mxu0 0.0
    %1182 = vmatpush2.msra.mxu0 0.0
    %1183 = vmatprep.subr.mxu0 0.0
    %1184 = vmatpush2.msra.mxu0 0.0
    %1185 = vmatprep.subr.mxu0 0.0
    %1186 = vmatpush2.msra.mxu0 0.0
    %1187 = vmatprep.mubr.f32.mxu0 0.0
    %1188 = vmatmul.mubr.f32.gmra.mxu0 %v1118
    %v1189 = vpop.f32.mrf.mxu0
    %v1190 = vadd.f32 %v1116, %v1189
    %v1191 = vpop.f32.mrf.mxu0
    %1192 = vmatprep.mubr.f32.mxu0 0.0
    %1193 = vmatmul.mubr.f32.gmra.mxu0 %v1121
    %v1194 = vpop.f32.mrf.mxu0
    %v1195 = vadd.f32 %v1116, %v1194
    %v1196 = vpop.f32.mrf.mxu0
    %1197 = vdwg.mxu0
    %v1198 = vmax.f32 %v1190, 0.0
    %v1199 = vmax.f32 %v1195, 0.0
    %v1200 = vlaneseq
    %v1201 = vshrl.u32 %v1200, 7
    %v1202 = vsub.s32 0, %v1201
    %v1203 = vrot.slane %v746, %v1202
    %v1205 = vsel %vm540, %v1198, 0
    %v1208 = vsel %vm540, %v1199, 0
    %1210 = vmatprep.subr.mxu0 0.0
    %1211 = vmatpush1.msra.mxu0 0.0
    %1212 = vmatprep.subr.mxu0 0.0
    %1213 = vmatpush1.msra.mxu0 0.0
    %1214 = vmatprep.subr.mxu0 0.0
    %1215 = vmatpush1.msra.mxu0 0.0
    %1216 = vmatprep.subr.mxu0 0.0
    %1217 = vmatpush1.msra.mxu0 0.0
    %1218 = vmatprep.subr.mxu0 0.0
    %1219 = vmatpush1.msra.mxu0 0.0
    %1220 = vmatprep.subr.mxu0 0.0
    %1221 = vmatpush1.msra.mxu0 0.0
    %1222 = vmatprep.subr.mxu0 0.0
    %1223 = vmatpush1.msra.mxu0 0.0
    %1224 = vmatprep.subr.mxu0 0.0
    %1225 = vmatpush1.msra.mxu0 0.0
    %1226 = vmatprep.subr.mxu0 0.0
    %1227 = vmatpush1.msra.mxu0 0.0
    %1228 = vmatprep.subr.mxu0 0.0
    %1229 = vmatpush1.msra.mxu0 0.0
    %1230 = vmatprep.subr.mxu0 0.0
    %1231 = vmatpush1.msra.mxu0 0.0
    %1232 = vmatprep.subr.mxu0 0.0
    %1233 = vmatpush1.msra.mxu0 0.0
    %1234 = vmatprep.subr.mxu0 0.0
    %1235 = vmatpush1.msra.mxu0 0.0
    %1236 = vmatprep.subr.mxu0 0.0
    %1237 = vmatpush1.msra.mxu0 0.0
    %1238 = vmatprep.subr.mxu0 0.0
    %1239 = vmatpush1.msra.mxu0 0.0
    %1240 = vmatprep.subr.mxu0 0.0
    %1241 = vmatpush1.msra.mxu0 %v745
    %1242 = vmatprep.subr.mxu0 0.0
    %1243 = vmatpush2.msra.mxu0 0.0
    %1244 = vmatprep.subr.mxu0 0.0
    %1245 = vmatpush2.msra.mxu0 0.0
    %1246 = vmatprep.subr.mxu0 0.0
    %1247 = vmatpush2.msra.mxu0 0.0
    %1248 = vmatprep.subr.mxu0 0.0
    %1249 = vmatpush2.msra.mxu0 0.0
    %1250 = vmatprep.subr.mxu0 0.0
    %1251 = vmatpush2.msra.mxu0 0.0
    %1252 = vmatprep.subr.mxu0 0.0
    %1253 = vmatpush2.msra.mxu0 0.0
    %1254 = vmatprep.subr.mxu0 0.0
    %1255 = vmatpush2.msra.mxu0 0.0
    %1256 = vmatprep.subr.mxu0 0.0
    %1257 = vmatpush2.msra.mxu0 0.0
    %1258 = vmatprep.subr.mxu0 0.0
    %1259 = vmatpush2.msra.mxu0 0.0
    %1260 = vmatprep.subr.mxu0 0.0
    %1261 = vmatpush2.msra.mxu0 0.0
    %1262 = vmatprep.subr.mxu0 0.0
    %1263 = vmatpush2.msra.mxu0 0.0
    %1264 = vmatprep.subr.mxu0 0.0
    %1265 = vmatpush2.msra.mxu0 0.0
    %1266 = vmatprep.subr.mxu0 0.0
    %1267 = vmatpush2.msra.mxu0 0.0
    %1268 = vmatprep.subr.mxu0 0.0
    %1269 = vmatpush2.msra.mxu0 0.0
    %1270 = vmatprep.subr.mxu0 0.0
    %1271 = vmatpush2.msra.mxu0 0.0
    %1272 = vmatprep.subr.mxu0 0.0
    %1273 = vmatpush2.msra.mxu0 0.0
    %1274 = vmatprep.mubr.f32.mxu0 0.0
    %1275 = vmatmul.mubr.f32.gmra.mxu0 %v1205
    %v1276 = vpop.f32.mrf.mxu0
    %v1277 = vadd.f32 %v1203, %v1276
    %v1278 = vpop.f32.mrf.mxu0
    %1279 = vmatprep.mubr.f32.mxu0 0.0
    %1280 = vmatmul.mubr.f32.gmra.mxu0 %v1208
    %v1281 = vpop.f32.mrf.mxu0
    %v1282 = vadd.f32 %v1203, %v1281
    %v1283 = vpop.f32.mrf.mxu0
    %1284 = vdwg.mxu0
    %v1285 = vmul.f32 %v1277, 1.442695
    %v1286 = vpow.pop %v1285
    %v1287 = vmul.f32 %v1282, 1.442695
    %v1288 = vpow.pop %v1287
    %v1289 = vmul.f32 %v1024, %v1286
    %v1290 = vmul.f32 %v1025, %v1288
    %1293 = vrot.lane.b32.xlu0 %v1277, 96
    %v1294 = vpop.permute.xlu0 %1293
    %1295 = vrot.lane.b32.xlu0 %v1282, 96
    %v1296 = vpop.permute.xlu0 %1295
    %v1299 = vadd.f32 %v1289, %v1294
    %v1300 = vadd.f32 %v1290, %v1296
    %v1301 = vlaneseq
    %v1302 = vshrl.u32 %v1301, 7
    %v1303 = vsub.s32 0, %v1302
    %v1304 = vrot.slane %v736, %v1303
    %v1306 = vsel %vm58, %v1299, 0
    %v1309 = vsel %vm58, %v1300, 0
    %1311 = vmatprep.subr.mxu0 0.0
    %1312 = vmatpush1.msra.mxu0 0.0
    %1313 = vmatprep.subr.mxu0 0.0
    %1314 = vmatpush1.msra.mxu0 0.0
    %1315 = vmatprep.subr.mxu0 0.0
    %1316 = vmatpush1.msra.mxu0 0.0
    %1317 = vmatprep.subr.mxu0 0.0
    %1318 = vmatpush1.msra.mxu0 0.0
    %1319 = vmatprep.subr.mxu0 0.0
    %1320 = vmatpush1.msra.mxu0 0.0
    %1321 = vmatprep.subr.mxu0 0.0
    %1322 = vmatpush1.msra.mxu0 0.0
    %1323 = vmatprep.subr.mxu0 0.0
    %1324 = vmatpush1.msra.mxu0 0.0
    %1325 = vmatprep.subr.mxu0 0.0
    %1326 = vmatpush1.msra.mxu0 0.0
    %1327 = vmatprep.subr.mxu0 0.0
    %1328 = vmatpush1.msra.mxu0 0.0
    %1329 = vmatprep.subr.mxu0 0.0
    %1330 = vmatpush1.msra.mxu0 0.0
    %1331 = vmatprep.subr.mxu0 0.0
    %1332 = vmatpush1.msra.mxu0 0.0
    %1333 = vmatprep.subr.mxu0 0.0
    %1334 = vmatpush1.msra.mxu0 0.0
    %1335 = vmatprep.subr.mxu0 0.0
    %1336 = vmatpush1.msra.mxu0 %v734
    %1337 = vmatprep.subr.mxu0 0.0
    %1338 = vmatpush1.msra.mxu0 %v733
    %1339 = vmatprep.subr.mxu0 0.0
    %1340 = vmatpush1.msra.mxu0 %v732
    %1341 = vmatprep.subr.mxu0 0.0
    %1342 = vmatpush1.msra.mxu0 %v731
    %1343 = vmatprep.subr.mxu0 0.0
    %1344 = vmatpush2.msra.mxu0 0.0
    %1345 = vmatprep.subr.mxu0 0.0
    %1346 = vmatpush2.msra.mxu0 0.0
    %1347 = vmatprep.subr.mxu0 0.0
    %1348 = vmatpush2.msra.mxu0 0.0
    %1349 = vmatprep.subr.mxu0 0.0
    %1350 = vmatpush2.msra.mxu0 0.0
    %1351 = vmatprep.subr.mxu0 0.0
    %1352 = vmatpush2.msra.mxu0 0.0
    %1353 = vmatprep.subr.mxu0 0.0
    %1354 = vmatpush2.msra.mxu0 0.0
    %1355 = vmatprep.subr.mxu0 0.0
    %1356 = vmatpush2.msra.mxu0 0.0
    %1357 = vmatprep.subr.mxu0 0.0
    %1358 = vmatpush2.msra.mxu0 0.0
    %1359 = vmatprep.subr.mxu0 0.0
    %1360 = vmatpush2.msra.mxu0 0.0
    %1361 = vmatprep.subr.mxu0 0.0
    %1362 = vmatpush2.msra.mxu0 0.0
    %1363 = vmatprep.subr.mxu0 0.0
    %1364 = vmatpush2.msra.mxu0 0.0
    %1365 = vmatprep.subr.mxu0 0.0
    %1366 = vmatpush2.msra.mxu0 0.0
    %1367 = vmatprep.subr.mxu0 0.0
    %1368 = vmatpush2.msra.mxu0 0.0
    %1369 = vmatprep.subr.mxu0 0.0
    %1370 = vmatpush2.msra.mxu0 0.0
    %1371 = vmatprep.subr.mxu0 0.0
    %1372 = vmatpush2.msra.mxu0 0.0
    %1373 = vmatprep.subr.mxu0 0.0
    %1374 = vmatpush2.msra.mxu0 0.0
    %1375 = vmatprep.mubr.f32.mxu0 0.0
    %1376 = vmatmul.mubr.f32.gmra.mxu0 %v1306
    %v1377 = vpop.f32.mrf.mxu0
    %v1378 = vadd.f32 %v1304, %v1377
    %v1379 = vpop.f32.mrf.mxu0
    %1380 = vmatprep.mubr.f32.mxu0 0.0
    %1381 = vmatmul.mubr.f32.gmra.mxu0 %v1309
    %v1382 = vpop.f32.mrf.mxu0
    %v1383 = vadd.f32 %v1304, %v1382
    %v1384 = vpop.f32.mrf.mxu0
    %1385 = vdwg.mxu0
    %v1386 = vmax.f32 %v1378, 0.0
    %v1387 = vmax.f32 %v1383, 0.0
    %v1388 = vlaneseq
    %v1389 = vshrl.u32 %v1388, 7
    %v1390 = vsub.s32 1, %v1389
    %v1391 = vrot.slane %v736, %v1390
    %v1393 = vsel %vm540, %v1386, 0
    %v1396 = vsel %vm540, %v1387, 0
    %1398 = vmatprep.subr.mxu0 0.0
    %1399 = vmatpush1.msra.mxu0 0.0
    %1400 = vmatprep.subr.mxu0 0.0
    %1401 = vmatpush1.msra.mxu0 0.0
    %1402 = vmatprep.subr.mxu0 0.0
    %1403 = vmatpush1.msra.mxu0 0.0
    %1404 = vmatprep.subr.mxu0 0.0
    %1405 = vmatpush1.msra.mxu0 0.0
    %1406 = vmatprep.subr.mxu0 0.0
    %1407 = vmatpush1.msra.mxu0 0.0
    %1408 = vmatprep.subr.mxu0 0.0
    %1409 = vmatpush1.msra.mxu0 0.0
    %1410 = vmatprep.subr.mxu0 0.0
    %1411 = vmatpush1.msra.mxu0 0.0
    %1412 = vmatprep.subr.mxu0 0.0
    %1413 = vmatpush1.msra.mxu0 0.0
    %1414 = vmatprep.subr.mxu0 0.0
    %1415 = vmatpush1.msra.mxu0 0.0
    %1416 = vmatprep.subr.mxu0 0.0
    %1417 = vmatpush1.msra.mxu0 0.0
    %1418 = vmatprep.subr.mxu0 0.0
    %1419 = vmatpush1.msra.mxu0 0.0
    %1420 = vmatprep.subr.mxu0 0.0
    %1421 = vmatpush1.msra.mxu0 0.0
    %1422 = vmatprep.subr.mxu0 0.0
    %1423 = vmatpush1.msra.mxu0 0.0
    %1424 = vmatprep.subr.mxu0 0.0
    %1425 = vmatpush1.msra.mxu0 0.0
    %1426 = vmatprep.subr.mxu0 0.0
    %1427 = vmatpush1.msra.mxu0 0.0
    %1428 = vmatprep.subr.mxu0 0.0
    %1429 = vmatpush1.msra.mxu0 %v735
    %1430 = vmatprep.subr.mxu0 0.0
    %1431 = vmatpush2.msra.mxu0 0.0
    %1432 = vmatprep.subr.mxu0 0.0
    %1433 = vmatpush2.msra.mxu0 0.0
    %1434 = vmatprep.subr.mxu0 0.0
    %1435 = vmatpush2.msra.mxu0 0.0
    %1436 = vmatprep.subr.mxu0 0.0
    %1437 = vmatpush2.msra.mxu0 0.0
    %1438 = vmatprep.subr.mxu0 0.0
    %1439 = vmatpush2.msra.mxu0 0.0
    %1440 = vmatprep.subr.mxu0 0.0
    %1441 = vmatpush2.msra.mxu0 0.0
    %1442 = vmatprep.subr.mxu0 0.0
    %1443 = vmatpush2.msra.mxu0 0.0
    %1444 = vmatprep.subr.mxu0 0.0
    %1445 = vmatpush2.msra.mxu0 0.0
    %1446 = vmatprep.subr.mxu0 0.0
    %1447 = vmatpush2.msra.mxu0 0.0
    %1448 = vmatprep.subr.mxu0 0.0
    %1449 = vmatpush2.msra.mxu0 0.0
    %1450 = vmatprep.subr.mxu0 0.0
    %1451 = vmatpush2.msra.mxu0 0.0
    %1452 = vmatprep.subr.mxu0 0.0
    %1453 = vmatpush2.msra.mxu0 0.0
    %1454 = vmatprep.subr.mxu0 0.0
    %1455 = vmatpush2.msra.mxu0 0.0
    %1456 = vmatprep.subr.mxu0 0.0
    %1457 = vmatpush2.msra.mxu0 0.0
    %1458 = vmatprep.subr.mxu0 0.0
    %1459 = vmatpush2.msra.mxu0 0.0
    %1460 = vmatprep.subr.mxu0 0.0
    %1461 = vmatpush2.msra.mxu0 0.0
    %1462 = vmatprep.mubr.f32.mxu0 0.0
    %1463 = vmatmul.mubr.f32.gmra.mxu0 %v1393
    %v1464 = vpop.f32.mrf.mxu0
    %v1465 = vadd.f32 %v1391, %v1464
    %v1466 = vpop.f32.mrf.mxu0
    %1467 = vmatprep.mubr.f32.mxu0 0.0
    %1468 = vmatmul.mubr.f32.gmra.mxu0 %v1396
    %v1469 = vpop.f32.mrf.mxu0
    %v1470 = vadd.f32 %v1391, %v1469
    %v1471 = vpop.f32.mrf.mxu0
    %1472 = vdwg.mxu0
    %v1473 = vmax.f32 %v1465, 0.0
    %v1474 = vmax.f32 %v1470, 0.0
    %v1475 = vlaneseq
    %v1476 = vshrl.u32 %v1475, 7
    %v1477 = vsub.s32 0, %v1476
    %v1478 = vrot.slane %v748, %v1477
    %v1480 = vsel %vm540, %v1473, 0
    %v1483 = vsel %vm540, %v1474, 0
    %1485 = vmatprep.subr.mxu0 0.0
    %1486 = vmatpush1.msra.mxu0 0.0
    %1487 = vmatprep.subr.mxu0 0.0
    %1488 = vmatpush1.msra.mxu0 0.0
    %1489 = vmatprep.subr.mxu0 0.0
    %1490 = vmatpush1.msra.mxu0 0.0
    %1491 = vmatprep.subr.mxu0 0.0
    %1492 = vmatpush1.msra.mxu0 0.0
    %1493 = vmatprep.subr.mxu0 0.0
    %1494 = vmatpush1.msra.mxu0 0.0
    %1495 = vmatprep.subr.mxu0 0.0
    %1496 = vmatpush1.msra.mxu0 0.0
    %1497 = vmatprep.subr.mxu0 0.0
    %1498 = vmatpush1.msra.mxu0 0.0
    %1499 = vmatprep.subr.mxu0 0.0
    %1500 = vmatpush1.msra.mxu0 0.0
    %1501 = vmatprep.subr.mxu0 0.0
    %1502 = vmatpush1.msra.mxu0 0.0
    %1503 = vmatprep.subr.mxu0 0.0
    %1504 = vmatpush1.msra.mxu0 0.0
    %1505 = vmatprep.subr.mxu0 0.0
    %1506 = vmatpush1.msra.mxu0 0.0
    %1507 = vmatprep.subr.mxu0 0.0
    %1508 = vmatpush1.msra.mxu0 0.0
    %1509 = vmatprep.subr.mxu0 0.0
    %1510 = vmatpush1.msra.mxu0 0.0
    %1511 = vmatprep.subr.mxu0 0.0
    %1512 = vmatpush1.msra.mxu0 0.0
    %1513 = vmatprep.subr.mxu0 0.0
    %1514 = vmatpush1.msra.mxu0 0.0
    %1515 = vmatprep.subr.mxu0 0.0
    %1516 = vmatpush1.msra.mxu0 %v747
    %1517 = vmatprep.subr.mxu0 0.0
    %1518 = vmatpush2.msra.mxu0 0.0
    %1519 = vmatprep.subr.mxu0 0.0
    %1520 = vmatpush2.msra.mxu0 0.0
    %1521 = vmatprep.subr.mxu0 0.0
    %1522 = vmatpush2.msra.mxu0 0.0
    %1523 = vmatprep.subr.mxu0 0.0
    %1524 = vmatpush2.msra.mxu0 0.0
    %1525 = vmatprep.subr.mxu0 0.0
    %1526 = vmatpush2.msra.mxu0 0.0
    %1527 = vmatprep.subr.mxu0 0.0
    %1528 = vmatpush2.msra.mxu0 0.0
    %1529 = vmatprep.subr.mxu0 0.0
    %1530 = vmatpush2.msra.mxu0 0.0
    %1531 = vmatprep.subr.mxu0 0.0
    %1532 = vmatpush2.msra.mxu0 0.0
    %1533 = vmatprep.subr.mxu0 0.0
    %1534 = vmatpush2.msra.mxu0 0.0
    %1535 = vmatprep.subr.mxu0 0.0
    %1536 = vmatpush2.msra.mxu0 0.0
    %1537 = vmatprep.subr.mxu0 0.0
    %1538 = vmatpush2.msra.mxu0 0.0
    %1539 = vmatprep.subr.mxu0 0.0
    %1540 = vmatpush2.msra.mxu0 0.0
    %1541 = vmatprep.subr.mxu0 0.0
    %1542 = vmatpush2.msra.mxu0 0.0
    %1543 = vmatprep.subr.mxu0 0.0
    %1544 = vmatpush2.msra.mxu0 0.0
    %1545 = vmatprep.subr.mxu0 0.0
    %1546 = vmatpush2.msra.mxu0 0.0
    %1547 = vmatprep.subr.mxu0 0.0
    %1548 = vmatpush2.msra.mxu0 0.0
    %1549 = vmatprep.mubr.f32.mxu0 0.0
    %1550 = vmatmul.mubr.f32.gmra.mxu0 %v1480
    %v1551 = vpop.f32.mrf.mxu0
    %v1552 = vadd.f32 %v1478, %v1551
    %v1553 = vpop.f32.mrf.mxu0
    %1554 = vmatprep.mubr.f32.mxu0 0.0
    %1555 = vmatmul.mubr.f32.gmra.mxu0 %v1483
    %v1556 = vpop.f32.mrf.mxu0
    %v1557 = vadd.f32 %v1478, %v1556
    %v1558 = vpop.f32.mrf.mxu0
    %1559 = vdwg.mxu0
    %v1560 = vmul.f32 %v1552, 1.442695
    %v1561 = vpow.pop %v1560
    %v1562 = vmul.f32 %v1557, 1.442695
    %v1563 = vpow.pop %v1562
    %v1564 = vmul.f32 %v1299, %v1561
    %v1565 = vmul.f32 %v1300, %v1563
    %1568 = vrot.lane.b32.xlu0 %v1552, 96
    %v1569 = vpop.permute.xlu0 %1568
    %1570 = vrot.lane.b32.xlu0 %v1557, 96
    %v1571 = vpop.permute.xlu0 %1570
    %v1574 = vadd.f32 %v1564, %v1569
    %v1575 = vadd.f32 %v1565, %v1571
    %v1576 = vlaneseq
    %v1577 = vshrl.u32 %v1576, 7
    %v1578 = vsub.s32 0, %v1577
    %v1579 = vrot.slane %v742, %v1578
    %v1581 = vsel %vm58, %v1574, 0
    %v1584 = vsel %vm58, %v1575, 0
    %1586 = vmatprep.subr.mxu0 0.0
    %1587 = vmatpush1.msra.mxu0 0.0
    %1588 = vmatprep.subr.mxu0 0.0
    %1589 = vmatpush1.msra.mxu0 0.0
    %1590 = vmatprep.subr.mxu0 0.0
    %1591 = vmatpush1.msra.mxu0 0.0
    %1592 = vmatprep.subr.mxu0 0.0
    %1593 = vmatpush1.msra.mxu0 0.0
    %1594 = vmatprep.subr.mxu0 0.0
    %1595 = vmatpush1.msra.mxu0 0.0
    %1596 = vmatprep.subr.mxu0 0.0
    %1597 = vmatpush1.msra.mxu0 0.0
    %1598 = vmatprep.subr.mxu0 0.0
    %1599 = vmatpush1.msra.mxu0 0.0
    %1600 = vmatprep.subr.mxu0 0.0
    %1601 = vmatpush1.msra.mxu0 0.0
    %1602 = vmatprep.subr.mxu0 0.0
    %1603 = vmatpush1.msra.mxu0 0.0
    %1604 = vmatprep.subr.mxu0 0.0
    %1605 = vmatpush1.msra.mxu0 0.0
    %1606 = vmatprep.subr.mxu0 0.0
    %1607 = vmatpush1.msra.mxu0 0.0
    %1608 = vmatprep.subr.mxu0 0.0
    %1609 = vmatpush1.msra.mxu0 0.0
    %1610 = vmatprep.subr.mxu0 0.0
    %1611 = vmatpush1.msra.mxu0 %v740
    %1612 = vmatprep.subr.mxu0 0.0
    %1613 = vmatpush1.msra.mxu0 %v739
    %1614 = vmatprep.subr.mxu0 0.0
    %1615 = vmatpush1.msra.mxu0 %v738
    %1616 = vmatprep.subr.mxu0 0.0
    %1617 = vmatpush1.msra.mxu0 %v737
    %1618 = vmatprep.subr.mxu0 0.0
    %1619 = vmatpush2.msra.mxu0 0.0
    %1620 = vmatprep.subr.mxu0 0.0
    %1621 = vmatpush2.msra.mxu0 0.0
    %1622 = vmatprep.subr.mxu0 0.0
    %1623 = vmatpush2.msra.mxu0 0.0
    %1624 = vmatprep.subr.mxu0 0.0
    %1625 = vmatpush2.msra.mxu0 0.0
    %1626 = vmatprep.subr.mxu0 0.0
    %1627 = vmatpush2.msra.mxu0 0.0
    %1628 = vmatprep.subr.mxu0 0.0
    %1629 = vmatpush2.msra.mxu0 0.0
    %1630 = vmatprep.subr.mxu0 0.0
    %1631 = vmatpush2.msra.mxu0 0.0
    %1632 = vmatprep.subr.mxu0 0.0
    %1633 = vmatpush2.msra.mxu0 0.0
    %1634 = vmatprep.subr.mxu0 0.0
    %1635 = vmatpush2.msra.mxu0 0.0
    %1636 = vmatprep.subr.mxu0 0.0
    %1637 = vmatpush2.msra.mxu0 0.0
    %1638 = vmatprep.subr.mxu0 0.0
    %1639 = vmatpush2.msra.mxu0 0.0
    %1640 = vmatprep.subr.mxu0 0.0
    %1641 = vmatpush2.msra.mxu0 0.0
    %1642 = vmatprep.subr.mxu0 0.0
    %1643 = vmatpush2.msra.mxu0 0.0
    %1644 = vmatprep.subr.mxu0 0.0
    %1645 = vmatpush2.msra.mxu0 0.0
    %1646 = vmatprep.subr.mxu0 0.0
    %1647 = vmatpush2.msra.mxu0 0.0
    %1648 = vmatprep.subr.mxu0 0.0
    %1649 = vmatpush2.msra.mxu0 0.0
    %1650 = vmatprep.mubr.f32.mxu0 0.0
    %1651 = vmatmul.mubr.f32.gmra.mxu0 %v1581
    %v1652 = vpop.f32.mrf.mxu0
    %v1653 = vadd.f32 %v1579, %v1652
    %v1654 = vpop.f32.mrf.mxu0
    %1655 = vmatprep.mubr.f32.mxu0 0.0
    %1656 = vmatmul.mubr.f32.gmra.mxu0 %v1584
    %v1657 = vpop.f32.mrf.mxu0
    %v1658 = vadd.f32 %v1579, %v1657
    %v1659 = vpop.f32.mrf.mxu0
    %1660 = vdwg.mxu0
    %v1661 = vmax.f32 %v1653, 0.0
    %v1662 = vmax.f32 %v1658, 0.0
    %v1663 = vlaneseq
    %v1664 = vshrl.u32 %v1663, 7
    %v1665 = vsub.s32 1, %v1664
    %v1666 = vrot.slane %v742, %v1665
    %v1668 = vsel %vm540, %v1661, 0
    %v1671 = vsel %vm540, %v1662, 0
    %1673 = vmatprep.subr.mxu0 0.0
    %1674 = vmatpush1.msra.mxu0 0.0
    %1675 = vmatprep.subr.mxu0 0.0
    %1676 = vmatpush1.msra.mxu0 0.0
    %1677 = vmatprep.subr.mxu0 0.0
    %1678 = vmatpush1.msra.mxu0 0.0
    %1679 = vmatprep.subr.mxu0 0.0
    %1680 = vmatpush1.msra.mxu0 0.0
    %1681 = vmatprep.subr.mxu0 0.0
    %1682 = vmatpush1.msra.mxu0 0.0
    %1683 = vmatprep.subr.mxu0 0.0
    %1684 = vmatpush1.msra.mxu0 0.0
    %1685 = vmatprep.subr.mxu0 0.0
    %1686 = vmatpush1.msra.mxu0 0.0
    %1687 = vmatprep.subr.mxu0 0.0
    %1688 = vmatpush1.msra.mxu0 0.0
    %1689 = vmatprep.subr.mxu0 0.0
    %1690 = vmatpush1.msra.mxu0 0.0
    %1691 = vmatprep.subr.mxu0 0.0
    %1692 = vmatpush1.msra.mxu0 0.0
    %1693 = vmatprep.subr.mxu0 0.0
    %1694 = vmatpush1.msra.mxu0 0.0
    %1695 = vmatprep.subr.mxu0 0.0
    %1696 = vmatpush1.msra.mxu0 0.0
    %1697 = vmatprep.subr.mxu0 0.0
    %1698 = vmatpush1.msra.mxu0 0.0
    %1699 = vmatprep.subr.mxu0 0.0
    %1700 = vmatpush1.msra.mxu0 0.0
    %1701 = vmatprep.subr.mxu0 0.0
    %1702 = vmatpush1.msra.mxu0 0.0
    %1703 = vmatprep.subr.mxu0 0.0
    %1704 = vmatpush1.msra.mxu0 %v741
    %1705 = vmatprep.subr.mxu0 0.0
    %1706 = vmatpush2.msra.mxu0 0.0
    %1707 = vmatprep.subr.mxu0 0.0
    %1708 = vmatpush2.msra.mxu0 0.0
    %1709 = vmatprep.subr.mxu0 0.0
    %1710 = vmatpush2.msra.mxu0 0.0
    %1711 = vmatprep.subr.mxu0 0.0
    %1712 = vmatpush2.msra.mxu0 0.0
    %1713 = vmatprep.subr.mxu0 0.0
    %1714 = vmatpush2.msra.mxu0 0.0
    %1715 = vmatprep.subr.mxu0 0.0
    %1716 = vmatpush2.msra.mxu0 0.0
    %1717 = vmatprep.subr.mxu0 0.0
    %1718 = vmatpush2.msra.mxu0 0.0
    %1719 = vmatprep.subr.mxu0 0.0
    %1720 = vmatpush2.msra.mxu0 0.0
    %1721 = vmatprep.subr.mxu0 0.0
    %1722 = vmatpush2.msra.mxu0 0.0
    %1723 = vmatprep.subr.mxu0 0.0
    %1724 = vmatpush2.msra.mxu0 0.0
    %1725 = vmatprep.subr.mxu0 0.0
    %1726 = vmatpush2.msra.mxu0 0.0
    %1727 = vmatprep.subr.mxu0 0.0
    %1728 = vmatpush2.msra.mxu0 0.0
    %1729 = vmatprep.subr.mxu0 0.0
    %1730 = vmatpush2.msra.mxu0 0.0
    %1731 = vmatprep.subr.mxu0 0.0
    %1732 = vmatpush2.msra.mxu0 0.0
    %1733 = vmatprep.subr.mxu0 0.0
    %1734 = vmatpush2.msra.mxu0 0.0
    %1735 = vmatprep.subr.mxu0 0.0
    %1736 = vmatpush2.msra.mxu0 0.0
    %1737 = vmatprep.mubr.f32.mxu0 0.0
    %1738 = vmatmul.mubr.f32.gmra.mxu0 %v1668
    %v1739 = vpop.f32.mrf.mxu0
    %v1740 = vadd.f32 %v1666, %v1739
    %v1741 = vpop.f32.mrf.mxu0
    %1742 = vmatprep.mubr.f32.mxu0 0.0
    %1743 = vmatmul.mubr.f32.gmra.mxu0 %v1671
    %v1744 = vpop.f32.mrf.mxu0
    %v1745 = vadd.f32 %v1666, %v1744
    %v1746 = vpop.f32.mrf.mxu0
    %1747 = vdwg.mxu0
    %v1748 = vmax.f32 %v1740, 0.0
    %v1749 = vmax.f32 %v1745, 0.0
    %v1750 = vlaneseq
    %v1751 = vshrl.u32 %v1750, 7
    %v1752 = vsub.s32 0, %v1751
    %v1753 = vrot.slane %v750, %v1752
    %v1755 = vsel %vm540, %v1748, 0
    %v1758 = vsel %vm540, %v1749, 0
    %1760 = vmatprep.subr.mxu0 0.0
    %1761 = vmatpush1.msra.mxu0 0.0
    %1762 = vmatprep.subr.mxu0 0.0
    %1763 = vmatpush1.msra.mxu0 0.0
    %1764 = vmatprep.subr.mxu0 0.0
    %1765 = vmatpush1.msra.mxu0 0.0
    %1766 = vmatprep.subr.mxu0 0.0
    %1767 = vmatpush1.msra.mxu0 0.0
    %1768 = vmatprep.subr.mxu0 0.0
    %1769 = vmatpush1.msra.mxu0 0.0
    %1770 = vmatprep.subr.mxu0 0.0
    %1771 = vmatpush1.msra.mxu0 0.0
    %1772 = vmatprep.subr.mxu0 0.0
    %1773 = vmatpush1.msra.mxu0 0.0
    %1774 = vmatprep.subr.mxu0 0.0
    %1775 = vmatpush1.msra.mxu0 0.0
    %1776 = vmatprep.subr.mxu0 0.0
    %1777 = vmatpush1.msra.mxu0 0.0
    %1778 = vmatprep.subr.mxu0 0.0
    %1779 = vmatpush1.msra.mxu0 0.0
    %1780 = vmatprep.subr.mxu0 0.0
    %1781 = vmatpush1.msra.mxu0 0.0
    %1782 = vmatprep.subr.mxu0 0.0
    %1783 = vmatpush1.msra.mxu0 0.0
    %1784 = vmatprep.subr.mxu0 0.0
    %1785 = vmatpush1.msra.mxu0 0.0
    %1786 = vmatprep.subr.mxu0 0.0
    %1787 = vmatpush1.msra.mxu0 0.0
    %1788 = vmatprep.subr.mxu0 0.0
    %1789 = vmatpush1.msra.mxu0 0.0
    %1790 = vmatprep.subr.mxu0 0.0
    %1791 = vmatpush1.msra.mxu0 %v749
    %1792 = vmatprep.subr.mxu0 0.0
    %1793 = vmatpush2.msra.mxu0 0.0
    %1794 = vmatprep.subr.mxu0 0.0
    %1795 = vmatpush2.msra.mxu0 0.0
    %1796 = vmatprep.subr.mxu0 0.0
    %1797 = vmatpush2.msra.mxu0 0.0
    %1798 = vmatprep.subr.mxu0 0.0
    %1799 = vmatpush2.msra.mxu0 0.0
    %1800 = vmatprep.subr.mxu0 0.0
    %1801 = vmatpush2.msra.mxu0 0.0
    %1802 = vmatprep.subr.mxu0 0.0
    %1803 = vmatpush2.msra.mxu0 0.0
    %1804 = vmatprep.subr.mxu0 0.0
    %1805 = vmatpush2.msra.mxu0 0.0
    %1806 = vmatprep.subr.mxu0 0.0
    %1807 = vmatpush2.msra.mxu0 0.0
    %1808 = vmatprep.subr.mxu0 0.0
    %1809 = vmatpush2.msra.mxu0 0.0
    %1810 = vmatprep.subr.mxu0 0.0
    %1811 = vmatpush2.msra.mxu0 0.0
    %1812 = vmatprep.subr.mxu0 0.0
    %1813 = vmatpush2.msra.mxu0 0.0
    %1814 = vmatprep.subr.mxu0 0.0
    %1815 = vmatpush2.msra.mxu0 0.0
    %1816 = vmatprep.subr.mxu0 0.0
    %1817 = vmatpush2.msra.mxu0 0.0
    %1818 = vmatprep.subr.mxu0 0.0
    %1819 = vmatpush2.msra.mxu0 0.0
    %1820 = vmatprep.subr.mxu0 0.0
    %1821 = vmatpush2.msra.mxu0 0.0
    %1822 = vmatprep.subr.mxu0 0.0
    %1823 = vmatpush2.msra.mxu0 0.0
    %1824 = vmatprep.mubr.f32.mxu0 0.0
    %1825 = vmatmul.mubr.f32.gmra.mxu0 %v1755
    %v1826 = vpop.f32.mrf.mxu0
    %v1827 = vadd.f32 %v1753, %v1826
    %v1828 = vpop.f32.mrf.mxu0
    %1829 = vmatprep.mubr.f32.mxu0 0.0
    %1830 = vmatmul.mubr.f32.gmra.mxu0 %v1758
    %v1831 = vpop.f32.mrf.mxu0
    %v1832 = vadd.f32 %v1753, %v1831
    %v1833 = vpop.f32.mrf.mxu0
    %1834 = vdwg.mxu0
    %v1835 = vmul.f32 %v1827, 1.442695
    %v1836 = vpow.pop %v1835
    %v1837 = vmul.f32 %v1832, 1.442695
    %v1838 = vpow.pop %v1837
    %v1839 = vmul.f32 %v1574, %v1836
    %v1840 = vmul.f32 %v1575, %v1838
    %1843 = vrot.lane.b32.xlu0 %v1827, 96
    %v1844 = vpop.permute.xlu0 %1843
    %1845 = vrot.lane.b32.xlu0 %v1832, 96
    %v1846 = vpop.permute.xlu0 %1845
    %v1849 = vadd.f32 %v1839, %v1844
    %v1850 = vadd.f32 %v1840, %v1846
    %v1851 = vmax.f32 %v1849, 0.0
    %v1852 = vmax.f32 %v1850, 0.0
    %v1853 = vand.u32 2147483647, %v1849
    %v1854 = vand.u32 2147483647, %v1850
    %v1855 = vsub.f32 0.0, %v1853
    %v1856 = vsub.f32 0.0, %v1854
    %v1857 = vmul.f32 %v1855, 1.442695
    %v1858 = vpow.pop %v1857
    %v1859 = vmul.f32 %v1856, 1.442695
    %v1860 = vpow.pop %v1859
    %v1861 = vadd.f32 %v1858, 1.0
    %v1862 = vadd.f32 %v1860, 1.0
    %v1863 = vlog2.pop %v1861
    %v1864 = vmul.f32 %v1863, 0.6931472
    %v1865 = vlog2.pop %v1862
    %v1866 = vmul.f32 %v1865, 0.6931472
    %v1867 = vadd.f32 %v1851, %v1864
    %v1868 = vadd.f32 %v1852, %v1866
    %v1869 = vmax.f32 %v1867, 1e-07
    %v1870 = vmax.f32 %v1868, 1e-07
    %v1871 = vmin.f32 %v1869, 10000000.0
    %v1872 = vmin.f32 %v1870, 10000000.0
    %1875 = vrot.lane.b32.xlu0 %v367, 32
    %v1876 = vpop.permute.xlu0 %1875
    %1877 = vrot.lane.b32.xlu0 %v368, 32
    %v1878 = vpop.permute.xlu0 %1877
    %1883 = vrot.lane.b32.xlu0 %v409, 32
    %v1884 = vpop.permute.xlu0 %1883
    %1885 = vrot.lane.b32.xlu0 %v410, 32
    %v1886 = vpop.permute.xlu0 %1885
    %1891 = vrot.lane.b32.xlu0 %v307, 40
    %v1892 = vpop.permute.xlu0 %1891
    %1893 = vrot.lane.b32.xlu0 %v312, 40
    %v1894 = vpop.permute.xlu0 %1893
    %1897 = vrot.lane.b32.xlu0 %v433, 48
    %v1898 = vpop.permute.xlu0 %1897
    %1899 = vrot.lane.b32.xlu0 %v434, 48
    %v1900 = vpop.permute.xlu0 %1899
    %v1903 = vsel %vm58, %v1871, %v1876
    %v1904 = vsel %vm58, %v1872, %v1878
    %vm1905 = vcmask 293888
    %v1906 = vsel %vm1905, %v1903, %v1884
    %v1907 = vsel %vm1905, %v1904, %v1886
    %vm1908 = vcmask 326656
    %v1909 = vsel %vm1908, %v1906, %v1892
    %v1910 = vsel %vm1908, %v1907, %v1894
    %vm1911 = vcmask 359424
    %v1912 = vsel %vm1911, %v1909, %v1892
    %v1913 = vsel %vm1911, %v1910, %v1894
    %vm1914 = vcmask 392192
    %v1915 = vsel %vm1914, %v1912, %v1898
    %v1916 = vsel %vm1914, %v1913, %v1900
    %vm1917 = vcmask 424960
    %v1918 = vsel %vm1917, %v1915, 0.0
    %v1919 = vsel %vm1917, %v1916, 0.0
    %1920 = vst [vmem:[#allocation2] sm:$0xff] %v1918
    %1921 = vst [vmem:[#allocation2 + $0x8] sm:$0xff] %v1919
    // Predicated region
    $region34: #{tpu_custom_call.1} parent=1 // pred_check
      _
    $region35: #{tpu_custom_call.1} parent=1 // pred_check_branch
      %1923 = sbr.rel (0) target = $region37
    $region36: #{tpu_custom_call.1} parent=1 // pred_region
      %s1925 = ssub.s32 256, 256
      %1926 = vsyncadd [#allocation3], %s1925
      %s1927 = sshll.u32 [#allocation2], 4
      %s1928 = int_to_ptr.vmem [resolvable:$true] %s1927
      %1933 = dma.vmem_to_hbm [thread:$0]  %s1928, 256, %s8, [#allocation3], 128, 128, 8
    $region37: #{tpu_custom_call.1} parent=1 // pred_fallthru
      _
    // Predicated region
    $region38: #{tpu_custom_call.1} parent=1 // pred_check
      _
    $region39: #{tpu_custom_call.1} parent=1 // pred_check_branch
      %1935 = sbr.rel (0) target = $region41
    $region40: #{tpu_custom_call.1} parent=1 // pred_region
      %1936 = dma.done [#allocation3], 256
    $region41: #{tpu_custom_call.1} parent=1 // pred_fallthru
      _
    %1937 = vsyncpa [#allocation3], 1

</llo_original>
